<compile_context>
chip_gen: v7x
topology: tpu7x:2x2x1
jax: 0.10.0
libtpu: 0.0.40
codegen_flags: <defaults>
</compile_context>

<pallas_src>
import functools

import jax
import jax.numpy as jnp
from jax import lax
from jax.experimental import pallas as pl
from jax.experimental.pallas import tpu as pltpu


# ---------------------------------------------------------------------------
# Pass 1: lane-dense streaming accumulation of sum(x) and sum(x*x).
# ---------------------------------------------------------------------------
def _stats_kernel(x_ref, o_ref):
    @pl.when(pl.program_id(0) == 0)
    def _():
        o_ref[...] = jnp.zeros_like(o_ref)

    xt = x_ref[...]                                           # (TR, 128) f32
    o_ref[0:1, :] += jnp.sum(xt, axis=0, keepdims=True)       # per-lane partial sum
    o_ref[1:2, :] += jnp.sum(xt * xt, axis=0, keepdims=True)  # per-lane partial sumsq


def _input_stats(x_flat, *, lanes=128, max_tile_rows=512):
    """x_flat: 1-D f32 -> (sum, sum of squares) scalars (zero padding is exact)."""
    total = int(x_flat.shape[0])
    rows = -(-total // lanes)
    tr = min(max_tile_rows, -(-rows // 8) * 8)                # fixed 8-aligned tile
    rows_p = -(-rows // tr) * tr
    pad = rows_p * lanes - total
    x2 = jnp.pad(x_flat, (0, pad)).reshape(rows_p, lanes)
    col = pl.pallas_call(
        _stats_kernel,
        out_shape=jax.ShapeDtypeStruct((2, lanes), jnp.float32),
        grid=(rows_p // tr,),
        in_specs=[pl.BlockSpec((tr, lanes), lambda i: (i, 0))],
        out_specs=pl.BlockSpec((2, lanes), lambda i: (0, 0)),
        compiler_params=pltpu.CompilerParams(dimension_semantics=("arbitrary",)),
        cost_estimate=pl.CostEstimate(flops=3 * rows_p * lanes, transcendentals=0,
                                      bytes_accessed=4 * (rows_p * lanes + 2 * lanes)),
    )(x2)
    return jnp.sum(col[0]), jnp.sum(col[1])


# ---------------------------------------------------------------------------
# Pass 2: fused (folded) conv+BN+ReLU and 2x2/stride-2 max pool, Nb images/step.
# ---------------------------------------------------------------------------
def _encoder_kernel(abpn_ref, sel_ref, x_ref, o_ref, pad_ref, *, nb, H, W, C):
    f32 = jnp.float32
    Hp, Wp = H + 2, W + 2
    Ho, Wo = Hp // 2, Wp // 2
    CWo = C * Wo
    hi = lax.Precision.HIGHEST

    # Zero-padded inputs, nb images stacked along sublanes: (nb*Hp, Wp).
    # (Re-zeroed every step: under "parallel" semantics program_id 0 may run on
    #  only one of v7x's TensorCores, so a step-0-only init would be unsafe.)
    pad_ref[...] = jnp.zeros_like(pad_ref)
    for n in range(nb):                                        # nb is small & static
        pad_ref[n * Hp + 1:n * Hp + 1 + H, 1:1 + W] = x_ref[n]

    # Row half of the 2x2/stride-2 pool: hardware strided sublane loads + VPU.
    ev = pad_ref[pl.ds(0, nb * Ho, stride=2), :]               # rows 0,2,4,...
    od = pad_ref[pl.ds(1, nb * Ho, stride=2), :]               # rows 1,3,5,...
    rmax = jnp.maximum(ev, od)                                 # (nb*Ho, Wp)
    rmin = jnp.minimum(ev, od)

    # Column half + channel replication: one constant 0/1 selection matmul per
    # pooled map.  sel[:, :C*Wo] picks even source columns, sel[:, C*Wo:] picks
    # odd ones, already replicated across the C output-channel lane slots.
    emax = jnp.dot(rmax, sel_ref[...], preferred_element_type=f32, precision=hi)
    emin = jnp.dot(rmin, sel_ref[...], preferred_element_type=f32, precision=hi)
    pmax = jnp.maximum(emax[:, :CWo], emax[:, CWo:])           # window max of padded x
    pmin = jnp.minimum(emin[:, :CWo], emin[:, CWo:])           # window min of padded x

    # Folded conv + BN + ReLU on the pooled maps (monotone-pool trick):
    # out_c = relu(a_c * (pool_max if a_c >= 0 else pool_min) + b_c).
    shape = (nb * Ho, CWo)
    a_row = jnp.broadcast_to(abpn_ref[0:1, :], shape)
    b_row = jnp.broadcast_to(abpn_ref[1:2, :], shape)
    pos_row = jnp.broadcast_to(abpn_ref[2:3, :], shape)        # 1.0 where a_c >= 0
    neg_row = jnp.broadcast_to(abpn_ref[3:4, :], shape)        # 1.0 where a_c <  0
    pooled = pmax * pos_row + pmin * neg_row
    o_ref[0] = jnp.maximum(pooled * a_row + b_row, 0.0)        # single lane-dense slab


def _pick_batch_block(N, H, W, C):
    """Images per grid step: VMEM-budgeted, grid kept >= 2 when N >= 2 (v7x)."""
    Hp, Wp = H + 2, W + 2
    Ho, Wo = Hp // 2, Wp // 2

    def padded_bytes(r, c):  # (8,128)-tile padded f32 footprint
        return 4 * (-(-r // 8) * 8) * (-(-c // 128) * 128)

    per_img = (2 * padded_bytes(H, W)            # double-buffered input block
               + padded_bytes(Hp, Wp)            # pad scratch
               + 2 * padded_bytes(Ho, Wp)        # row-pooled temporaries
               + 2 * padded_bytes(Ho, C * Wo))   # double-buffered output slab
    budget = 6 * 1024 * 1024                     # conservative for v7x 32 MiB scoped VMEM
    nb_cap = min(32, max(1, budget // max(per_img, 1)))   # 32 also bounds static unroll
    nb = max(1, min(nb_cap, N // 2)) if N >= 2 else 1
    while N % nb:
        nb -= 1
    return nb


@jax.jit
def encoder_sub_track_a(x_nchw, params):
    """x_nchw: (N, 1, H, W).  Returns (N, C, (H+2)//2, (W+2)//2) float32 (NCHW)."""
    N, Cin, H, W = x_nchw.shape
    assert Cin == 1 and H % 2 == 0 and W % 2 == 0
    C = params['w'].shape[0]
    Hp, Wp = H + 2, W + 2
    Ho, Wo = Hp // 2, Wp // 2
    CWo = C * Wo
    eps = 1e-3

    x3 = x_nchw.reshape(N, H, W).astype(jnp.float32)           # free reshape (C == 1)

    # --- Pass 1: lane-dense streaming sum / sum-of-squares (Pallas) ----------
    s, q = _input_stats(x3.reshape(-1))

    # --- Analytic training-mode BN statistics over the padded conv output ----
    # y1_c = w_c*xp + b_c over N*Hp*Wp positions; zero padding adds count only.
    n_tot = float(N * Hp * Wp)
    mean_xp = s / n_tot
    var_xp = jnp.maximum(q / n_tot - mean_xp * mean_xp, 0.0)   # biased variance
    # TODO(synk): E[x^2]-E[x]^2 in f32 can cancel for very large N*H*W; switch to
    # a shifted two-pass accumulation before scaling this up.
    w, b = params['w'], params['b']
    a_fold = params['gamma'] * w * lax.rsqrt(w * w * var_xp + eps)
    b_fold = params['beta'] - a_fold * mean_xp                 # (dead (b-b) term removed)

    # Per-lane folded params + sign masks, repeated Wo times so the kernel's
    # (nb*Ho, C*Wo) output slab consumes them with plain broadcast FMAs.
    pos = (a_fold >= 0.0).astype(jnp.float32)
    abpn = jnp.stack([jnp.repeat(a_fold, Wo), jnp.repeat(b_fold, Wo),
                      jnp.repeat(pos, Wo), jnp.repeat(1.0 - pos, Wo)], axis=0)

    # Constant 0/1 lane-compaction + channel-replication matrix (built once).
    kk = jnp.arange(Wp)[:, None]
    jj = jnp.arange(2 * CWo)[None, :]
    wt = (jj % CWo) % Wo
    src = jnp.where(jj < CWo, 2 * wt, 2 * wt + 1)
    sel = (kk == src).astype(jnp.float32)                      # (Wp, 2*C*Wo)

    # --- Pass 2: batch-aggregated fused pool + affine + ReLU -----------------
    nb = _pick_batch_block(N, H, W, C)
    grid = (N // nb,)
    kernel = functools.partial(_encoder_kernel, nb=nb, H=H, W=W, C=C)
    flops_per_step = (nb * Hp * Wp + 2 * nb * Ho * Wp
                      + 2 * 2 * nb * Ho * Wp * (2 * CWo)
                      + 8 * nb * Ho * CWo)
    out = pl.pallas_call(
        kernel,
        out_shape=jax.ShapeDtypeStruct((N // nb, nb * Ho, CWo), jnp.float32),
        grid=grid,
        in_specs=[
            pl.BlockSpec((4, CWo), lambda g: (0, 0)),          # folded a,b + sign masks
            pl.BlockSpec((Wp, 2 * CWo), lambda g: (0, 0)),     # constant selection matrix
            pl.BlockSpec((nb, H, W), lambda g: (g, 0, 0)),     # Nb images per step
        ],
        out_specs=pl.BlockSpec((1, nb * Ho, CWo), lambda g: (g, 0, 0)),
        scratch_shapes=[pltpu.VMEM((nb * Hp, Wp), jnp.float32)],
        compiler_params=pltpu.CompilerParams(
            dimension_semantics=("parallel",),
            vmem_limit_bytes=32 * 1024 * 1024),
        cost_estimate=pl.CostEstimate(
            flops=grid[0] * flops_per_step, transcendentals=0,
            bytes_accessed=4 * (N * H * W + N * Ho * CWo
                                + grid[0] * (4 * CWo + Wp * 2 * CWo))),
    )(abpn, sel, x3)

    # Lane-dense slab -> NCHW: wrapper-side layout plumbing only.
    return out.reshape(N, Ho, C, Wo).transpose(0, 2, 1, 3)


# ---------------------------------------------------------------------------
# Pure-JAX reference (training-mode BatchNorm, biased variance) for self-check.
# ---------------------------------------------------------------------------
def reference(x_nchw, p):
    x = x_nchw[:, 0].astype(jnp.float32)                       # (N, H, W)
    xp = jnp.pad(x, ((0, 0), (1, 1), (1, 1)))
    y = (xp[:, None, :, :] * p['w'][None, :, None, None]
         + p['b'][None, :, None, None])                        # (N, C, Hp, Wp)
    mu = y.mean(axis=(0, 2, 3), keepdims=True)
    var = y.var(axis=(0, 2, 3), keepdims=True)
    h = jnp.maximum((y - mu) * lax.rsqrt(var + 1e-3) * p['gamma'][None, :, None, None]
                    + p['beta'][None, :, None, None], 0.0)
    N, C, Hp, Wp = h.shape
    return h.reshape(N, C, Hp // 2, 2, Wp // 2, 2).max(axis=(3, 5))


if __name__ == "__main__":
    key = jax.random.PRNGKey(0)
    kx, kw, kb = jax.random.split(key, 3)
    x = jax.random.normal(kx, (2, 1, 16, 16), jnp.float32)     # NCHW, like PyTorch
    params = {
        'w': jax.random.normal(kw, (4,), jnp.float32) * 0.5,   # Conv2d(1,4,1) weight
        'b': jax.random.normal(kb, (4,), jnp.float32) * 0.1,   # Conv2d bias
        'gamma': jnp.ones((4,), jnp.float32),                  # BatchNorm2d defaults
        'beta': jnp.zeros((4,), jnp.float32),
    }

    out = encoder_sub_track_a(x, params)
    jax.block_until_ready(out)
    assert out.shape == (2, 4, 9, 9), out.shape

    ref = reference(x, params)
    max_err = float(jnp.max(jnp.abs(out - ref)))
    assert max_err < 1e-4, f"mismatch vs reference: {max_err}"
    print("KERNEL_OK")
</pallas_src>

<mosaic_0001>
module attributes {stable_mosaic.version = 11 : i64} {
  func.func @_stats_kernel(%arg0: i32, %arg1: memref<8x128xf32, #tpu.memory_space<vmem>>, %arg2: memref<2x128xf32, #tpu.memory_space<vmem>>) attributes {dimension_semantics = [#tpu.dimension_semantics<arbitrary>], iteration_bounds = array<i64: 1>, scalar_prefetch = 0 : i64, scratch_operands = 0 : i64, tpu.core_type = #tpu.core_type<tc>, window_params = [{transform_indices = @transform_0, window_bounds = array<i64: 8, 128>}, {pipeline_mode = #tpu.pipeline_mode<synchronous>, transform_indices = @transform_1, window_bounds = array<i64: 2, 128>}]} {
    %c0_i32 = arith.constant 0 : i32
    %0 = arith.cmpi eq, %arg0, %c0_i32 : i32
    %1 = arith.extui %0 : i1 to i32
    %c0_i32_0 = arith.constant 0 : i32
    %2 = arith.cmpi ne, %1, %c0_i32_0 : i32
    scf.if %2 {
      %cst_10 = arith.constant 0.000000e+00 : f32
      %15 = vector.broadcast %cst_10 : f32 to vector<2x128xf32>
      %c0_11 = arith.constant 0 : index
      %c0_12 = arith.constant 0 : index
      %16 = vector.load %arg2[%c0_11, %c0_12] : memref<2x128xf32, #tpu.memory_space<vmem>>, vector<2x128xf32>
      tpu.vector_store %arg2[%c0_11, %c0_12], %15 {strides = array<i32>} : memref<2x128xf32, #tpu.memory_space<vmem>>, vector<2x128xf32>,
    } else {
    }
    %c0 = arith.constant 0 : index
    %c0_1 = arith.constant 0 : index
    %3 = vector.load %arg1[%c0, %c0_1] : memref<8x128xf32, #tpu.memory_space<vmem>>, vector<8x128xf32>
    %c0_2 = arith.constant 0 : index
    %c0_3 = arith.constant 0 : index
    %4 = vector.load %arg2[%c0_2, %c0_3] : memref<2x128xf32, #tpu.memory_space<vmem>>, vector<1x128xf32>
    %cst = arith.constant dense<0.000000e+00> : vector<128xf32>
    %5 = vector.multi_reduction <add>, %3, %cst [0] : vector<8x128xf32> to vector<128xf32>
    %6 = vector.shape_cast %5 : vector<128xf32> to vector<1x128xf32>
    %7 = arith.addf %4, %6 : vector<1x128xf32>
    %c0_4 = arith.constant 0 : index
    %c0_5 = arith.constant 0 : index
    %8 = vector.load %arg2[%c0_4, %c0_5] : memref<2x128xf32, #tpu.memory_space<vmem>>, vector<1x128xf32>
    tpu.vector_store %arg2[%c0_4, %c0_5], %7 {strides = array<i32>} : memref<2x128xf32, #tpu.memory_space<vmem>>, vector<1x128xf32>,
    %c1 = arith.constant 1 : index
    %c0_6 = arith.constant 0 : index
    %9 = vector.load %arg2[%c1, %c0_6] : memref<2x128xf32, #tpu.memory_space<vmem>>, vector<1x128xf32>
    %10 = arith.mulf %3, %3 : vector<8x128xf32>
    %cst_7 = arith.constant dense<0.000000e+00> : vector<128xf32>
    %11 = vector.multi_reduction <add>, %10, %cst_7 [0] : vector<8x128xf32> to vector<128xf32>
    %12 = vector.shape_cast %11 : vector<128xf32> to vector<1x128xf32>
    %13 = arith.addf %9, %12 : vector<1x128xf32>
    %c1_8 = arith.constant 1 : index
    %c0_9 = arith.constant 0 : index
    %14 = vector.load %arg2[%c1_8, %c0_9] : memref<2x128xf32, #tpu.memory_space<vmem>>, vector<1x128xf32>
    tpu.vector_store %arg2[%c1_8, %c0_9], %13 {strides = array<i32>} : memref<2x128xf32, #tpu.memory_space<vmem>>, vector<1x128xf32>,
    return
  }
  func.func @transform_0(%arg0: i32) -> (i32, i32) {
    %c0_i32 = arith.constant 0 : i32
    %c0_i32_0 = arith.constant 0 : i32
    return %arg0, %c0_i32 : i32, i32
  }
  func.func @transform_1(%arg0: i32) -> (i32, i32) {
    %c0_i32 = arith.constant 0 : i32
    %c0_i32_0 = arith.constant 0 : i32
    %c0_i32_1 = arith.constant 0 : i32
    return %c0_i32, %c0_i32_0 : i32, i32
  }
}

module attributes {stable_mosaic.version = 11 : i64} {
  func.func @_encoder_kernel(%arg0: i32, %arg1: memref<4x36xf32, #tpu.memory_space<vmem>>, %arg2: memref<18x72xf32, #tpu.memory_space<vmem>>, %arg3: memref<1x16x16xf32, #tpu.memory_space<vmem>>, %arg4: memref<1x9x36xf32, #tpu.memory_space<vmem>>, %arg5: memref<18x18xf32, #tpu.memory_space<vmem>>) attributes {dimension_semantics = [#tpu.dimension_semantics<parallel>], iteration_bounds = array<i64: 2>, scalar_prefetch = 0 : i64, scratch_operands = 1 : i64, tpu.core_type = #tpu.core_type<tc>, window_params = [{pipeline_mode = #tpu.pipeline_mode<synchronous>, transform_indices = @transform_0, window_bounds = array<i64: 4, 36>}, {pipeline_mode = #tpu.pipeline_mode<synchronous>, transform_indices = @transform_1, window_bounds = array<i64: 18, 72>}, {transform_indices = @transform_2, window_bounds = array<i64: 1, 16, 16>}, {transform_indices = @transform_3, window_bounds = array<i64: 1, 9, 36>}]} {
    %cst = arith.constant 0.000000e+00 : f32
    %0 = vector.broadcast %cst : f32 to vector<18x18xf32>
    %c0 = arith.constant 0 : index
    %c0_0 = arith.constant 0 : index
    %1 = vector.load %arg5[%c0, %c0_0] : memref<18x18xf32, #tpu.memory_space<vmem>>, vector<18x18xf32>
    tpu.vector_store %arg5[%c0, %c0_0], %0 {strides = array<i32>} : memref<18x18xf32, #tpu.memory_space<vmem>>, vector<18x18xf32>,
    %c0_1 = arith.constant 0 : index
    %c0_2 = arith.constant 0 : index
    %c0_3 = arith.constant 0 : index
    %2 = vector.load %arg3[%c0_1, %c0_2, %c0_3] : memref<1x16x16xf32, #tpu.memory_space<vmem>>, vector<1x16x16xf32>
    %3 = vector.shape_cast %2 : vector<1x16x16xf32> to vector<16x16xf32>
    %c1 = arith.constant 1 : index
    %c1_4 = arith.constant 1 : index
    %4 = vector.load %arg5[%c1, %c1_4] : memref<18x18xf32, #tpu.memory_space<vmem>>, vector<16x16xf32>
    tpu.vector_store %arg5[%c1, %c1_4], %3 {strides = array<i32>} : memref<18x18xf32, #tpu.memory_space<vmem>>, vector<16x16xf32>,
    %c0_5 = arith.constant 0 : index
    %c0_6 = arith.constant 0 : index
    %5 = tpu.strided_load %arg5[%c0_5, %c0_6] {strides = array<i32: 2, 1>} : memref<18x18xf32, #tpu.memory_space<vmem>>, vector<9x18xf32>
    %c1_7 = arith.constant 1 : index
    %c0_8 = arith.constant 0 : index
    %6 = tpu.strided_load %arg5[%c1_7, %c0_8] {strides = array<i32: 2, 1>} : memref<18x18xf32, #tpu.memory_space<vmem>>, vector<9x18xf32>
    %7 = arith.maximumf %5, %6 : vector<9x18xf32>
    %8 = arith.minimumf %5, %6 : vector<9x18xf32>
    %c0_9 = arith.constant 0 : index
    %c0_10 = arith.constant 0 : index
    %9 = vector.load %arg2[%c0_9, %c0_10] : memref<18x72xf32, #tpu.memory_space<vmem>>, vector<18x72xf32>
    %cst_11 = arith.constant dense<0.000000e+00> : vector<9x72xf32>
    %10 = tpu.matmul %7, %9, %cst_11 {dimension_numbers = #tpu.dot_dimension_numbers<[1], [0], [0], [1], [0, 0, 1, 1], [], []>, precision = #tpu.contract_precision<fp32>} : vector<9x18xf32>, vector<18x72xf32>, vector<9x72xf32> -> vector<9x72xf32>
    %c0_12 = arith.constant 0 : index
    %c0_13 = arith.constant 0 : index
    %11 = vector.load %arg2[%c0_12, %c0_13] : memref<18x72xf32, #tpu.memory_space<vmem>>, vector<18x72xf32>
    %cst_14 = arith.constant dense<0.000000e+00> : vector<9x72xf32>
    %12 = tpu.matmul %8, %11, %cst_14 {dimension_numbers = #tpu.dot_dimension_numbers<[1], [0], [0], [1], [0, 0, 1, 1], [], []>, precision = #tpu.contract_precision<fp32>} : vector<9x18xf32>, vector<18x72xf32>, vector<9x72xf32> -> vector<9x72xf32>
    %13 = vector.extract_strided_slice %10 {offsets = [0, 0], sizes = [9, 36], strides = [1, 1]} : vector<9x72xf32> to vector<9x36xf32>
    %14 = vector.extract_strided_slice %10 {offsets = [0, 36], sizes = [9, 36], strides = [1, 1]} : vector<9x72xf32> to vector<9x36xf32>
    %15 = arith.maximumf %13, %14 : vector<9x36xf32>
    %16 = vector.extract_strided_slice %12 {offsets = [0, 0], sizes = [9, 36], strides = [1, 1]} : vector<9x72xf32> to vector<9x36xf32>
    %17 = vector.extract_strided_slice %12 {offsets = [0, 36], sizes = [9, 36], strides = [1, 1]} : vector<9x72xf32> to vector<9x36xf32>
    %18 = arith.minimumf %16, %17 : vector<9x36xf32>
    %c0_15 = arith.constant 0 : index
    %c0_16 = arith.constant 0 : index
    %19 = vector.load %arg1[%c0_15, %c0_16] : memref<4x36xf32, #tpu.memory_space<vmem>>, vector<1x36xf32>
    %20 = vector.shape_cast %19 : vector<1x36xf32> to vector<1x36xf32>
    %21 = vector.broadcast %20 : vector<1x36xf32> to vector<9x36xf32>
    %c1_17 = arith.constant 1 : index
    %c0_18 = arith.constant 0 : index
    %22 = vector.load %arg1[%c1_17, %c0_18] : memref<4x36xf32, #tpu.memory_space<vmem>>, vector<1x36xf32>
    %23 = vector.shape_cast %22 : vector<1x36xf32> to vector<1x36xf32>
    %24 = vector.broadcast %23 : vector<1x36xf32> to vector<9x36xf32>
    %c2 = arith.constant 2 : index
    %c0_19 = arith.constant 0 : index
    %25 = vector.load %arg1[%c2, %c0_19] : memref<4x36xf32, #tpu.memory_space<vmem>>, vector<1x36xf32>
    %26 = vector.shape_cast %25 : vector<1x36xf32> to vector<1x36xf32>
    %27 = vector.broadcast %26 : vector<1x36xf32> to vector<9x36xf32>
    %c3 = arith.constant 3 : index
    %c0_20 = arith.constant 0 : index
    %28 = vector.load %arg1[%c3, %c0_20] : memref<4x36xf32, #tpu.memory_space<vmem>>, vector<1x36xf32>
    %29 = vector.shape_cast %28 : vector<1x36xf32> to vector<1x36xf32>
    %30 = vector.broadcast %29 : vector<1x36xf32> to vector<9x36xf32>
    %31 = arith.mulf %15, %27 : vector<9x36xf32>
    %32 = arith.mulf %18, %30 : vector<9x36xf32>
    %33 = arith.addf %31, %32 : vector<9x36xf32>
    %34 = arith.mulf %33, %21 : vector<9x36xf32>
    %35 = arith.addf %34, %24 : vector<9x36xf32>
    %cst_21 = arith.constant 0.000000e+00 : f32
    %36 = vector.broadcast %cst_21 : f32 to vector<9x36xf32>
    %37 = arith.maximumf %35, %36 : vector<9x36xf32>
    %c0_22 = arith.constant 0 : index
    %c0_23 = arith.constant 0 : index
    %c0_24 = arith.constant 0 : index
    %38 = vector.load %arg4[%c0_22, %c0_23, %c0_24] : memref<1x9x36xf32, #tpu.memory_space<vmem>>, vector<1x9x36xf32>
    %39 = vector.shape_cast %38 : vector<1x9x36xf32> to vector<9x36xf32>
    %40 = vector.shape_cast %37 : vector<9x36xf32> to vector<1x9x36xf32>
    tpu.vector_store %arg4[%c0_22, %c0_23, %c0_24], %40 {strides = array<i32>} : memref<1x9x36xf32, #tpu.memory_space<vmem>>, vector<1x9x36xf32>,
    return
  }
  func.func @transform_0(%arg0: i32) -> (i32, i32) {
    %c0_i32 = arith.constant 0 : i32
    %c0_i32_0 = arith.constant 0 : i32
    %c0_i32_1 = arith.constant 0 : i32
    return %c0_i32, %c0_i32_0 : i32, i32
  }
  func.func @transform_1(%arg0: i32) -> (i32, i32) {
    %c0_i32 = arith.constant 0 : i32
    %c0_i32_0 = arith.constant 0 : i32
    %c0_i32_1 = arith.constant 0 : i32
    return %c0_i32, %c0_i32_0 : i32, i32
  }
  func.func @transform_2(%arg0: i32) -> (i32, i32, i32) {
    %c0_i32 = arith.constant 0 : i32
    %c0_i32_0 = arith.constant 0 : i32
    %c0_i32_1 = arith.constant 0 : i32
    return %arg0, %c0_i32, %c0_i32_0 : i32, i32, i32
  }
  func.func @transform_3(%arg0: i32) -> (i32, i32, i32) {
    %c0_i32 = arith.constant 0 : i32
    %c0_i32_0 = arith.constant 0 : i32
    %c0_i32_1 = arith.constant 0 : i32
    return %arg0, %c0_i32, %c0_i32_0 : i32, i32, i32
  }
}

</mosaic_0001>

<llo_original>
// kernel: encoder_sub_track_a.2
$region0: #{encoder_sub_track_a.2}
  #allocation0 [shape = 'u32[]', space=smem, size = 0x4, offset = 0x4, fixed_abs, tag = 'smem constant byte address 0x4 - core index']
  #allocation1 [shape = 'u32[144,128]{1,0:T(1,128)}', space=vmem, size = 0x12000, scoped, tag = 'internal scratch']
  %s0 = inlined_call_operand.vmem [shape: f32[8,128], index: 0, kind: input, shape index: {}]
  %s1 = inlined_call_operand.vmem [shape: f32[2,128], index: 1, kind: output, shape index: {}]
  %s2 = sld [smem:[#allocation0]]
  $region18: #{encoder_sub_track_a.2} parent=0
    _
  %s4 = ssub.s32 1, %s2
  %s5 = scalar_select 0, %s4, %s2
  // Predicated region
  $region2: #{encoder_sub_track_a.2} parent=0 // pred_check
    _
  $region3: #{encoder_sub_track_a.2} parent=0 // pred_check_branch
    %7 = sbr.rel (0) target = $region5
  $region4: #{encoder_sub_track_a.2} parent=0 // pred_region
    _
  $region5: #{encoder_sub_track_a.2} parent=0 // pred_fallthru
    _
  %p8 = scmp.eq.s32.totalorder 0, 0
  // Predicated region
  $region6: #{encoder_sub_track_a.2} parent=0 // pred_check
    %p9 = pneg %p8
  $region7: #{encoder_sub_track_a.2} parent=0 // pred_check_branch
    %11 = sbr.rel (%p9) target = $region9
  $region8: #{encoder_sub_track_a.2} parent=0 // pred_region
    %12 = vst [vmem:[%s1] sm:$0x3] 0.0
  $region9: #{encoder_sub_track_a.2} parent=0 // pred_fallthru
    _
  %v13 = vld [vmem:[%s0] sm:$0xff]
  %v14 = vld [vmem:[%s1] sm:$0x1]
  %v15 = vrot.slane %v13, 4
  %v16 = vadd.f32 %v13, %v15
  %v17 = vrot.slane %v16, 2
  %v18 = vadd.f32 %v16, %v17
  %v19 = vrot.slane %v18, 1
  %v20 = vadd.f32 %v18, %v19
  %v21 = vadd.f32 %v14, %v20
  %22 = vst [vmem:[%s1] sm:$0x1] %v21
  %v23 = vld [vmem:[%s1 + $0x1] sm:$0x1]
  %v24 = vmul.f32 %v13, %v13
  %v25 = vrot.slane %v24, 4
  %v26 = vadd.f32 %v24, %v25
  %v27 = vrot.slane %v26, 2
  %v28 = vadd.f32 %v26, %v27
  %v29 = vrot.slane %v28, 1
  %v30 = vadd.f32 %v28, %v29
  %v31 = vadd.f32 %v23, %v30
  %32 = vst [vmem:[%s1 + $0x1] sm:$0x1] %v31
  // Predicated region
  $region10: #{encoder_sub_track_a.2} parent=0 // pred_check
    _
  $region11: #{encoder_sub_track_a.2} parent=0 // pred_check_branch
    %34 = sbr.rel (0) target = $region13
  $region12: #{encoder_sub_track_a.2} parent=0 // pred_region
    _
  $region13: #{encoder_sub_track_a.2} parent=0 // pred_fallthru
    _
  // Predicated region
  $region14: #{encoder_sub_track_a.2} parent=0 // pred_check
    _
  $region15: #{encoder_sub_track_a.2} parent=0 // pred_check_branch
    %36 = sbr.rel (0) target = $region17
  $region16: #{encoder_sub_track_a.2} parent=0 // pred_region
    _
  $region17: #{encoder_sub_track_a.2} parent=0 // pred_fallthru
    _

// kernel: encoder_sub_track_a.3
$region0: #{encoder_sub_track_a.3}
  #allocation0 [shape = 'u32[]', space=smem, size = 0x4, offset = 0x4, fixed_abs, tag = 'smem constant byte address 0x4 - core index']
  #allocation1 [shape = 'u32[144,128]{1,0:T(1,128)}', space=vmem, size = 0x12000, scoped, tag = 'internal scratch']
  #allocation2 [shape = 'f32[18,18]{1,0:T(8,128)}', space=vmem, size = 0x3000, scoped, tag = 'scratch operand']
  %s0 = inlined_call_operand.vmem [shape: f32[4,36], index: 0, kind: input, shape index: {}]
  %s1 = inlined_call_operand.vmem [shape: f32[18,72], index: 1, kind: input, shape index: {}]
  %s2 = inlined_call_operand.vmem [shape: f32[2,16,16], index: 2, kind: input, shape index: {}]
  %s3 = inlined_call_operand.vmem [shape: f32[2,9,36], index: 3, kind: output, shape index: {}]
  %s4 = sld [smem:[#allocation0]]
  $region45: #{encoder_sub_track_a.3} parent=0
    _
  %s6 = ssub.s32 1, %s4
  %s7 = scalar_select 0, %s6, %s4
  loop: start=0, step=1, limit=4
  $region2: #{encoder_sub_track_a.3} parent=0 // loop_pre_header
    _
  $region3: #{encoder_sub_track_a.3} parent=0 // loop_header
    %s9 = sphi 0, %s13
    %p10 = scmp.ge.s32.totalorder %s9, 4
    %s17 = sphi 0, %s17
    %s19 = sphi 0, %s17
    %s20 = sphi 0, %s19
    %s34 = sphi 0, %s20
    %s38 = sphi 0, %s38
    %s40 = sphi 0, %s38
    %s41 = sphi 0, %s40
    %s55 = sphi 0, %s41
    %s61 = sphi 0, %s63
    %s64 = sphi 0, %s61
    %s65 = sphi 0, %s64
    %s81 = sphi 0, %s65
    %s87 = sphi 0, %s89
    %s90 = sphi 0, %s87
    %s91 = sphi 0, %s90
    %s107 = sphi 0, %s91
  $region4: #{encoder_sub_track_a.3} parent=0 // loop_header_branch
    %12 = sbr.rel (%p10) target = $region8
  $region5: #{encoder_sub_track_a.3} parent=0 // loop_body
    %s14 = ssub.s32 %s9, 1
    %s15 = ssub.s32 %s9, 2
    %s16 = sadd.s32 %s9, 1
    %s18 = sadd.s32 %s17, 1
    %p21 = scmp.eq.s32.totalorder %s9, 1
    %p22 = scmp.ne.s32.totalorder %s17, %s19
    %p23 = scmp.eq.s32.totalorder %s9, 0
    %p24 = por %p22, %p23
    %p25 = scmp.ne.s32.totalorder %s17, %s19
    %p26 = scmp.eq.s32.totalorder %s14, 1
    %p27 = por %p25, %p26
    %p28 = scmp.ne.s32.totalorder %s19, %s20
    %p29 = scmp.eq.s32.totalorder %s14, 0
    %p30 = por %p28, %p29
    %p31 = scmp.ne.s32.totalorder %s19, %s20
    %p32 = scmp.eq.s32.totalorder %s15, 1
    %p33 = por %p31, %p32
    %p35 = scmp.ne.s32.totalorder %s20, %s34
    %p36 = scmp.eq.s32.totalorder %s15, 0
    %p37 = por %p35, %p36
    %s39 = sadd.s32 %s38, 1
    %p42 = scmp.eq.s32.totalorder %s9, 1
    %p43 = scmp.ne.s32.totalorder %s38, %s40
    %p44 = scmp.eq.s32.totalorder %s9, 0
    %p45 = por %p43, %p44
    %p46 = scmp.ne.s32.totalorder %s38, %s40
    %p47 = scmp.eq.s32.totalorder %s14, 1
    %p48 = por %p46, %p47
    %p49 = scmp.ne.s32.totalorder %s40, %s41
    %p50 = scmp.eq.s32.totalorder %s14, 0
    %p51 = por %p49, %p50
    %p52 = scmp.ne.s32.totalorder %s40, %s41
    %p53 = scmp.eq.s32.totalorder %s15, 1
    %p54 = por %p52, %p53
    %p56 = scmp.ne.s32.totalorder %s41, %s55
    %p57 = scmp.eq.s32.totalorder %s15, 0
    %p58 = por %p56, %p57
    %s59 = ssub.s32 %s9, %s16
    %p60 = scmp.eq.s32.totalorder %s59, 0
    %s62 = sadd.s32 %s61, 1
    %s63 = scalar_select %p60, %s61, %s62
    %p66 = pneg %p60
    %p67 = scmp.eq.s32.totalorder %s9, 1
    %p68 = por %p66, %p67
    %p69 = scmp.ne.s32.totalorder %s61, %s64
    %p70 = scmp.eq.s32.totalorder %s9, 0
    %p71 = por %p69, %p70
    %p72 = scmp.ne.s32.totalorder %s61, %s64
    %p73 = scmp.eq.s32.totalorder %s14, 1
    %p74 = por %p72, %p73
    %p75 = scmp.ne.s32.totalorder %s64, %s65
    %p76 = scmp.eq.s32.totalorder %s14, 0
    %p77 = por %p75, %p76
    %p78 = scmp.ne.s32.totalorder %s64, %s65
    %p79 = scmp.eq.s32.totalorder %s15, 1
    %p80 = por %p78, %p79
    %p82 = scmp.ne.s32.totalorder %s65, %s81
    %p83 = scmp.eq.s32.totalorder %s15, 0
    %p84 = por %p82, %p83
    %s85 = ssub.s32 %s9, %s16
    %p86 = scmp.eq.s32.totalorder %s85, 0
    %s88 = sadd.s32 %s87, 1
    %s89 = scalar_select %p86, %s87, %s88
    %p92 = pneg %p86
    %p93 = scmp.eq.s32.totalorder %s9, 1
    %p94 = por %p92, %p93
    %p95 = scmp.ne.s32.totalorder %s87, %s90
    %p96 = scmp.eq.s32.totalorder %s9, 0
    %p97 = por %p95, %p96
    %p98 = scmp.ne.s32.totalorder %s87, %s90
    %p99 = scmp.eq.s32.totalorder %s14, 1
    %p100 = por %p98, %p99
    %p101 = scmp.ne.s32.totalorder %s90, %s91
    %p102 = scmp.eq.s32.totalorder %s14, 0
    %p103 = por %p101, %p102
    %p104 = scmp.ne.s32.totalorder %s90, %s91
    %p105 = scmp.eq.s32.totalorder %s15, 1
    %p106 = por %p104, %p105
    %p108 = scmp.ne.s32.totalorder %s91, %s107
    %p109 = scmp.eq.s32.totalorder %s15, 0
    %p110 = por %p108, %p109
    %p111 = scmp.le.s32.totalorder 1, %s9
    %p112 = scmp.lt.s32.totalorder %s9, 3
    %p113 = pnand %p111, %p112
    %p114 = pneg %p113
    // Predicated region
    $region9: #{encoder_sub_track_a.3} parent=5 // pred_check
      _
    $region10: #{encoder_sub_track_a.3} parent=5 // pred_check_branch
      %116 = sbr.rel (%p113) target = $region12
    $region11: #{encoder_sub_track_a.3} parent=5 // pred_region
      %s117 = ssub.s32 %s9, 1
      // Predicated region
      $region13: #{encoder_sub_track_a.3} parent=11 // pred_check
        %p118 = pneg %p30
      $region14: #{encoder_sub_track_a.3} parent=11 // pred_check_branch
        %120 = sbr.rel (%p118) target = $region16
      $region15: #{encoder_sub_track_a.3} parent=11 // pred_region
        _
      $region16: #{encoder_sub_track_a.3} parent=11 // pred_fallthru
        _
      // Predicated region
      $region17: #{encoder_sub_track_a.3} parent=11 // pred_check
        %p121 = pneg %p51
      $region18: #{encoder_sub_track_a.3} parent=11 // pred_check_branch
        %123 = sbr.rel (%p121) target = $region20
      $region19: #{encoder_sub_track_a.3} parent=11 // pred_region
        _
      $region20: #{encoder_sub_track_a.3} parent=11 // pred_fallthru
        _
    $region12: #{encoder_sub_track_a.3} parent=5 // pred_fallthru
      _
    %p124 = scmp.lt.s32.totalorder %s9, 2
    // Predicated region
    $region21: #{encoder_sub_track_a.3} parent=5 // pred_check
      %p125 = pneg %p124
    $region22: #{encoder_sub_track_a.3} parent=5 // pred_check_branch
      %127 = sbr.rel (%p125) target = $region24
    $region23: #{encoder_sub_track_a.3} parent=5 // pred_region
      // Predicated region
      $region25: #{encoder_sub_track_a.3} parent=23 // pred_check
        %p128 = pneg %p71
      $region26: #{encoder_sub_track_a.3} parent=23 // pred_check_branch
        %130 = sbr.rel (%p128) target = $region28
      $region27: #{encoder_sub_track_a.3} parent=23 // pred_region
        %p131 = scmp.lt.s32.totalorder %s9, 1
        %s132 = scalar_select %p131, %s9, 1
        %s133 = smul.addr %s132, 2
        %s134 = smul.addr %s133, 8
        %s135 = scalar_lea.vmem %s2, %s134
      $region28: #{encoder_sub_track_a.3} parent=23 // pred_fallthru
        _
    $region24: #{encoder_sub_track_a.3} parent=5 // pred_fallthru
      _
    %p136 = scmp.le.s32.totalorder 1, %s9
    %p137 = scmp.lt.s32.totalorder %s9, 3
    %p138 = pnand %p136, %p137
    %p139 = pneg %p138
    // Predicated region
    $region29: #{encoder_sub_track_a.3} parent=5 // pred_check
      _
    $region30: #{encoder_sub_track_a.3} parent=5 // pred_check_branch
      %141 = sbr.rel (%p138) target = $region32
    $region31: #{encoder_sub_track_a.3} parent=5 // pred_region
      %s142 = ssub.s32 %s9, 1
      %p143 = pneg %p30
      %p144 = pneg %p27
      %p145 = pneg %p51
      %p146 = pneg %p48
      %p147 = scmp.lt.s32.totalorder %s14, 1
      %s148 = scalar_select %p147, %s14, 1
      %s149 = smul.addr %s148, 2
      %s150 = smul.addr %s149, 8
      %s151 = scalar_lea.vmem %s2, %s150
      %p152 = pneg %p77
      %p153 = pneg %p74
      %p154 = pneg %p103
      %p155 = pneg %p100
      %p156 = scmp.lt.s32.totalorder %s14, 1
      %s157 = scalar_select %p156, %s14, 1
      %s158 = smul.addr %s157, 2
      %s159 = smul.addr %s158, 8
      %s160 = scalar_lea.vmem %s3, %s159
      %p161 = scmp.lt.s32.totalorder %s14, 1
      %s162 = scalar_select %p161, %s14, 1
      %s163 = smul.addr %s162, 2
      %s164 = smul.addr %s163, 8
      %s165 = scalar_lea.vmem %s2, %s164
      %p166 = scmp.lt.s32.totalorder %s14, 1
      %s167 = scalar_select %p166, %s14, 1
      %s168 = smul.addr %s167, 2
      %s169 = smul.addr %s168, 8
      %s170 = scalar_lea.vmem %s3, %s169
      %vm171 = vcmask 146432
      %172 = vst.msk [vmem:[#allocation2] sm:$0xff] %vm171, 0.0
      %173 = vst.msk [vmem:[#allocation2 + $0x8] sm:$0xff] %vm171, 0.0
      %vm174 = vcmask 140288
      %175 = vst.msk [vmem:[#allocation2 + $0x10] sm:$0x3] %vm174, 0.0
      %v176 = vld [vmem:[%s165] sm:$0xff]
      %v177 = vld [vmem:[%s165 + $0x8] sm:$0xff]
      %180 = vrot.lane.b32.xlu0 %v176, 1
      %v181 = vpop.permute.xlu0 %180
      %182 = vrot.lane.b32.xlu0 %v177, 1
      %v183 = vpop.permute.xlu0 %182
      %vm186 = vcmask 138248
      %187 = vst.msk [vmem:[#allocation2 + $0x1] sm:$0xff] %vm186, %v181
      %188 = vst.msk [vmem:[#allocation2 + $0x9] sm:$0xff] %vm186, %v183
      %v189 = vld [vmem:[#allocation2] ss:$2 sm:$0xff]
      %s190 = scalar_lea.vmem [#allocation2], 16
      %v191 = vld [vmem:[%s190] ss:$2 sm:$0x1]
      %s192 = scalar_lea.vmem [#allocation2], 1
      %v193 = vld [vmem:[%s192] ss:$2 sm:$0xff]
      %s194 = scalar_lea.vmem [#allocation2], 17
      %v195 = vld [vmem:[%s194] ss:$2 sm:$0x1]
      %v196 = vmax.f32 %v189, %v193
      %v197 = vmax.f32 %v191, %v195
      %v198 = vmin.f32 %v189, %v193
      %v199 = vmin.f32 %v191, %v195
      %v200 = vld [vmem:[%s1] sm:$0xff]
      %v201 = vld [vmem:[%s1 + $0x8] sm:$0xff]
      %v202 = vld [vmem:[%s1 + $0x10] sm:$0x3]
      %v204 = vsel %vm171, %v196, 0
      %v207 = vsel %vm171, %v197, 0
      %vm209 = vcmask 1041408
      %v211 = vsel %vm209, %v202, 0
      %213 = vmatprep.subr.mxu0 0.0
      %v214 = vand.u32 %v200, 4294901760
      %215 = vmatpush1.msra.mxu0 %v214
      %216 = vmatprep.subr.mxu0 0.0
      %v217 = vand.u32 %v201, 4294901760
      %218 = vmatpush1.msra.mxu0 %v217
      %219 = vmatprep.subr.mxu0 0.0
      %v220 = vand.u32 %v211, 4294901760
      %221 = vmatpush1.msra.mxu0 %v220
      %222 = vmatprep.subr.mxu0 0.0
      %223 = vmatpush1.msra.mxu0 0.0
      %224 = vmatprep.subr.mxu0 0.0
      %225 = vmatpush1.msra.mxu0 0.0
      %226 = vmatprep.subr.mxu0 0.0
      %227 = vmatpush1.msra.mxu0 0.0
      %228 = vmatprep.subr.mxu0 0.0
      %229 = vmatpush1.msra.mxu0 0.0
      %230 = vmatprep.subr.mxu0 0.0
      %231 = vmatpush1.msra.mxu0 0.0
      %232 = vmatprep.subr.mxu0 0.0
      %233 = vmatpush1.msra.mxu0 0.0
      %234 = vmatprep.subr.mxu0 0.0
      %235 = vmatpush1.msra.mxu0 0.0
      %236 = vmatprep.subr.mxu0 0.0
      %237 = vmatpush1.msra.mxu0 0.0
      %238 = vmatprep.subr.mxu0 0.0
      %239 = vmatpush1.msra.mxu0 0.0
      %240 = vmatprep.subr.mxu0 0.0
      %241 = vmatpush1.msra.mxu0 0.0
      %242 = vmatprep.subr.mxu0 0.0
      %243 = vmatpush1.msra.mxu0 0.0
      %244 = vmatprep.subr.mxu0 0.0
      %245 = vmatpush1.msra.mxu0 0.0
      %246 = vmatprep.subr.mxu0 0.0
      %247 = vmatpush1.msra.mxu0 0.0
      %248 = vmatprep.subr.mxu0 0.0
      %249 = vmatpush1.msra.mxu0 0.0
      %250 = vmatprep.subr.mxu0 0.0
      %251 = vmatpush1.msra.mxu0 0.0
      %252 = vmatprep.subr.mxu0 0.0
      %253 = vmatpush1.msra.mxu0 0.0
      %254 = vmatprep.subr.mxu0 0.0
      %255 = vmatpush1.msra.mxu0 0.0
      %256 = vmatprep.subr.mxu0 0.0
      %257 = vmatpush1.msra.mxu0 0.0
      %258 = vmatprep.subr.mxu0 0.0
      %259 = vmatpush1.msra.mxu0 0.0
      %260 = vmatprep.subr.mxu0 0.0
      %261 = vmatpush1.msra.mxu0 0.0
      %262 = vmatprep.subr.mxu0 0.0
      %263 = vmatpush1.msra.mxu0 0.0
      %264 = vmatprep.subr.mxu0 0.0
      %265 = vmatpush1.msra.mxu0 0.0
      %266 = vmatprep.subr.mxu0 0.0
      %267 = vmatpush1.msra.mxu0 0.0
      %268 = vmatprep.subr.mxu0 0.0
      %269 = vmatpush1.msra.mxu0 0.0
      %270 = vmatprep.subr.mxu0 0.0
      %271 = vmatpush1.msra.mxu0 0.0
      %272 = vmatprep.subr.mxu0 0.0
      %273 = vmatpush1.msra.mxu0 0.0
      %274 = vmatprep.subr.mxu0 0.0
      %275 = vmatpush1.msra.mxu0 0.0
      %276 = vmatprep.subr.mxu0 0.0
      %277 = vmatpush1.msra.mxu0 0.0
      %278 = vmatprep.subr.mxu0 0.0
      %279 = vmatpush1.msra.mxu0 0.0
      %280 = vmatprep.mubr.f32.mxu0 0.0
      %v281 = vand.u32 %v204, 4294901760
      %v282 = vsub.f32 %v204, %v281
      %v283 = vand.u32 %v282, 4294901760
      %v284 = vsub.f32 %v282, %v283
      %v285 = vand.u32 %v284, 4294901760
      %286 = vmatmul.mubr.f32.gmra.mrb[0].mxu0 %v285
      %v287 = vpop.f32.mrb[0].mxu0
      %v288 = vadd.f32 0.0, %v287
      %v289 = vpop.f32.mrb[0].mxu0
      %290 = vmatprep.mubr.f32.mxu0 0.0
      %v291 = vand.u32 %v207, 4294901760
      %v292 = vsub.f32 %v207, %v291
      %v293 = vand.u32 %v292, 4294901760
      %v294 = vsub.f32 %v292, %v293
      %v295 = vand.u32 %v294, 4294901760
      %296 = vmatmul.mubr.f32.gmra.mrb[0].mxu0 %v295
      %v297 = vpop.f32.mrb[0].mxu0
      %v298 = vadd.f32 0.0, %v297
      %v299 = vpop.f32.mrb[0].mxu0
      %300 = vdwg.mxu0
      %301 = vmatprep.subr.mxu0 0.0
      %v302 = vand.u32 %v200, 4294901760
      %v303 = vsub.f32 %v200, %v302
      %v304 = vand.u32 %v303, 4294901760
      %v305 = vsub.f32 %v303, %v304
      %v306 = vand.u32 %v305, 4294901760
      %307 = vmatpush1.msra.mxu0 %v306
      %308 = vmatprep.subr.mxu0 0.0
      %v309 = vand.u32 %v201, 4294901760
      %v310 = vsub.f32 %v201, %v309
      %v311 = vand.u32 %v310, 4294901760
      %v312 = vsub.f32 %v310, %v311
      %v313 = vand.u32 %v312, 4294901760
      %314 = vmatpush1.msra.mxu0 %v313
      %315 = vmatprep.subr.mxu0 0.0
      %v316 = vand.u32 %v211, 4294901760
      %v317 = vsub.f32 %v211, %v316
      %v318 = vand.u32 %v317, 4294901760
      %v319 = vsub.f32 %v317, %v318
      %v320 = vand.u32 %v319, 4294901760
      %321 = vmatpush1.msra.mxu0 %v320
      %322 = vmatprep.subr.mxu0 0.0
      %323 = vmatpush1.msra.mxu0 0.0
      %324 = vmatprep.subr.mxu0 0.0
      %325 = vmatpush1.msra.mxu0 0.0
      %326 = vmatprep.subr.mxu0 0.0
      %327 = vmatpush1.msra.mxu0 0.0
      %328 = vmatprep.subr.mxu0 0.0
      %329 = vmatpush1.msra.mxu0 0.0
      %330 = vmatprep.subr.mxu0 0.0
      %331 = vmatpush1.msra.mxu0 0.0
      %332 = vmatprep.subr.mxu0 0.0
      %333 = vmatpush1.msra.mxu0 0.0
      %334 = vmatprep.subr.mxu0 0.0
      %335 = vmatpush1.msra.mxu0 0.0
      %336 = vmatprep.subr.mxu0 0.0
      %337 = vmatpush1.msra.mxu0 0.0
      %338 = vmatprep.subr.mxu0 0.0
      %339 = vmatpush1.msra.mxu0 0.0
      %340 = vmatprep.subr.mxu0 0.0
      %341 = vmatpush1.msra.mxu0 0.0
      %342 = vmatprep.subr.mxu0 0.0
      %343 = vmatpush1.msra.mxu0 0.0
      %344 = vmatprep.subr.mxu0 0.0
      %345 = vmatpush1.msra.mxu0 0.0
      %346 = vmatprep.subr.mxu0 0.0
      %347 = vmatpush1.msra.mxu0 0.0
      %348 = vmatprep.subr.mxu0 0.0
      %349 = vmatpush1.msra.mxu0 0.0
      %350 = vmatprep.subr.mxu0 0.0
      %351 = vmatpush1.msra.mxu0 0.0
      %352 = vmatprep.subr.mxu0 0.0
      %353 = vmatpush1.msra.mxu0 0.0
      %354 = vmatprep.subr.mxu0 0.0
      %355 = vmatpush1.msra.mxu0 0.0
      %356 = vmatprep.subr.mxu0 0.0
      %357 = vmatpush1.msra.mxu0 0.0
      %358 = vmatprep.subr.mxu0 0.0
      %359 = vmatpush1.msra.mxu0 0.0
      %360 = vmatprep.subr.mxu0 0.0
      %361 = vmatpush1.msra.mxu0 0.0
      %362 = vmatprep.subr.mxu0 0.0
      %363 = vmatpush1.msra.mxu0 0.0
      %364 = vmatprep.subr.mxu0 0.0
      %365 = vmatpush1.msra.mxu0 0.0
      %366 = vmatprep.subr.mxu0 0.0
      %367 = vmatpush1.msra.mxu0 0.0
      %368 = vmatprep.subr.mxu0 0.0
      %369 = vmatpush1.msra.mxu0 0.0
      %370 = vmatprep.subr.mxu0 0.0
      %371 = vmatpush1.msra.mxu0 0.0
      %372 = vmatprep.subr.mxu0 0.0
      %373 = vmatpush1.msra.mxu0 0.0
      %374 = vmatprep.subr.mxu0 0.0
      %375 = vmatpush1.msra.mxu0 0.0
      %376 = vmatprep.subr.mxu0 0.0
      %377 = vmatpush1.msra.mxu0 0.0
      %378 = vmatprep.subr.mxu0 0.0
      %379 = vmatpush1.msra.mxu0 0.0
      %380 = vmatprep.mubr.f32.mxu0 0.0
      %v381 = vand.u32 %v204, 4294901760
      %382 = vmatmul.mubr.f32.gmra.mrb[0].mxu0 %v381
      %v383 = vpop.f32.mrb[0].mxu0
      %v384 = vadd.f32 %v288, %v383
      %v385 = vpop.f32.mrb[0].mxu0
      %386 = vmatprep.mubr.f32.mxu0 0.0
      %v387 = vand.u32 %v207, 4294901760
      %388 = vmatmul.mubr.f32.gmra.mrb[0].mxu0 %v387
      %v389 = vpop.f32.mrb[0].mxu0
      %v390 = vadd.f32 %v298, %v389
      %v391 = vpop.f32.mrb[0].mxu0
      %392 = vdwg.mxu0
      %393 = vmatprep.subr.mxu0 0.0
      %v394 = vand.u32 %v200, 4294901760
      %v395 = vsub.f32 %v200, %v394
      %396 = vmatpush1.msra.mxu0 %v395
      %397 = vmatprep.subr.mxu0 0.0
      %v398 = vand.u32 %v201, 4294901760
      %v399 = vsub.f32 %v201, %v398
      %400 = vmatpush1.msra.mxu0 %v399
      %401 = vmatprep.subr.mxu0 0.0
      %v402 = vand.u32 %v211, 4294901760
      %v403 = vsub.f32 %v211, %v402
      %404 = vmatpush1.msra.mxu0 %v403
      %405 = vmatprep.subr.mxu0 0.0
      %406 = vmatpush1.msra.mxu0 0.0
      %407 = vmatprep.subr.mxu0 0.0
      %408 = vmatpush1.msra.mxu0 0.0
      %409 = vmatprep.subr.mxu0 0.0
      %410 = vmatpush1.msra.mxu0 0.0
      %411 = vmatprep.subr.mxu0 0.0
      %412 = vmatpush1.msra.mxu0 0.0
      %413 = vmatprep.subr.mxu0 0.0
      %414 = vmatpush1.msra.mxu0 0.0
      %415 = vmatprep.subr.mxu0 0.0
      %416 = vmatpush1.msra.mxu0 0.0
      %417 = vmatprep.subr.mxu0 0.0
      %418 = vmatpush1.msra.mxu0 0.0
      %419 = vmatprep.subr.mxu0 0.0
      %420 = vmatpush1.msra.mxu0 0.0
      %421 = vmatprep.subr.mxu0 0.0
      %422 = vmatpush1.msra.mxu0 0.0
      %423 = vmatprep.subr.mxu0 0.0
      %424 = vmatpush1.msra.mxu0 0.0
      %425 = vmatprep.subr.mxu0 0.0
      %426 = vmatpush1.msra.mxu0 0.0
      %427 = vmatprep.subr.mxu0 0.0
      %428 = vmatpush1.msra.mxu0 0.0
      %429 = vmatprep.subr.mxu0 0.0
      %430 = vmatpush1.msra.mxu0 0.0
      %431 = vmatprep.subr.mxu0 0.0
      %432 = vmatpush1.msra.mxu0 0.0
      %433 = vmatprep.subr.mxu0 0.0
      %434 = vmatpush1.msra.mxu0 0.0
      %435 = vmatprep.subr.mxu0 0.0
      %436 = vmatpush1.msra.mxu0 0.0
      %437 = vmatprep.subr.mxu0 0.0
      %438 = vmatpush1.msra.mxu0 0.0
      %439 = vmatprep.subr.mxu0 0.0
      %440 = vmatpush1.msra.mxu0 0.0
      %441 = vmatprep.subr.mxu0 0.0
      %442 = vmatpush1.msra.mxu0 0.0
      %443 = vmatprep.subr.mxu0 0.0
      %444 = vmatpush1.msra.mxu0 0.0
      %445 = vmatprep.subr.mxu0 0.0
      %446 = vmatpush1.msra.mxu0 0.0
      %447 = vmatprep.subr.mxu0 0.0
      %448 = vmatpush1.msra.mxu0 0.0
      %449 = vmatprep.subr.mxu0 0.0
      %450 = vmatpush1.msra.mxu0 0.0
      %451 = vmatprep.subr.mxu0 0.0
      %452 = vmatpush1.msra.mxu0 0.0
      %453 = vmatprep.subr.mxu0 0.0
      %454 = vmatpush1.msra.mxu0 0.0
      %455 = vmatprep.subr.mxu0 0.0
      %456 = vmatpush1.msra.mxu0 0.0
      %457 = vmatprep.subr.mxu0 0.0
      %458 = vmatpush1.msra.mxu0 0.0
      %459 = vmatprep.subr.mxu0 0.0
      %460 = vmatpush1.msra.mxu0 0.0
      %461 = vmatprep.subr.mxu0 0.0
      %462 = vmatpush1.msra.mxu0 0.0
      %463 = vmatprep.mubr.f32.mxu0 0.0
      %v464 = vand.u32 %v204, 4294901760
      %v465 = vsub.f32 %v204, %v464
      %466 = vmatmul.mubr.f32.gmra.mrb[0].mxu0 %v465
      %v467 = vpop.f32.mrb[0].mxu0
      %v468 = vadd.f32 %v384, %v467
      %v469 = vpop.f32.mrb[0].mxu0
      %470 = vmatprep.mubr.f32.mxu0 0.0
      %v471 = vand.u32 %v207, 4294901760
      %v472 = vsub.f32 %v207, %v471
      %473 = vmatmul.mubr.f32.gmra.mrb[0].mxu0 %v472
      %v474 = vpop.f32.mrb[0].mxu0
      %v475 = vadd.f32 %v390, %v474
      %v476 = vpop.f32.mrb[0].mxu0
      %477 = vdwg.mxu0
      %478 = vmatprep.subr.mxu0 0.0
      %v479 = vand.u32 %v200, 4294901760
      %480 = vmatpush1.msra.mxu0 %v479
      %481 = vmatprep.subr.mxu0 0.0
      %v482 = vand.u32 %v201, 4294901760
      %483 = vmatpush1.msra.mxu0 %v482
      %484 = vmatprep.subr.mxu0 0.0
      %v485 = vand.u32 %v211, 4294901760
      %486 = vmatpush1.msra.mxu0 %v485
      %487 = vmatprep.subr.mxu0 0.0
      %488 = vmatpush1.msra.mxu0 0.0
      %489 = vmatprep.subr.mxu0 0.0
      %490 = vmatpush1.msra.mxu0 0.0
      %491 = vmatprep.subr.mxu0 0.0
      %492 = vmatpush1.msra.mxu0 0.0
      %493 = vmatprep.subr.mxu0 0.0
      %494 = vmatpush1.msra.mxu0 0.0
      %495 = vmatprep.subr.mxu0 0.0
      %496 = vmatpush1.msra.mxu0 0.0
      %497 = vmatprep.subr.mxu0 0.0
      %498 = vmatpush1.msra.mxu0 0.0
      %499 = vmatprep.subr.mxu0 0.0
      %500 = vmatpush1.msra.mxu0 0.0
      %501 = vmatprep.subr.mxu0 0.0
      %502 = vmatpush1.msra.mxu0 0.0
      %503 = vmatprep.subr.mxu0 0.0
      %504 = vmatpush1.msra.mxu0 0.0
      %505 = vmatprep.subr.mxu0 0.0
      %506 = vmatpush1.msra.mxu0 0.0
      %507 = vmatprep.subr.mxu0 0.0
      %508 = vmatpush1.msra.mxu0 0.0
      %509 = vmatprep.subr.mxu0 0.0
      %510 = vmatpush1.msra.mxu0 0.0
      %511 = vmatprep.subr.mxu0 0.0
      %512 = vmatpush1.msra.mxu0 0.0
      %513 = vmatprep.subr.mxu0 0.0
      %514 = vmatpush1.msra.mxu0 0.0
      %515 = vmatprep.subr.mxu0 0.0
      %516 = vmatpush1.msra.mxu0 0.0
      %517 = vmatprep.subr.mxu0 0.0
      %518 = vmatpush1.msra.mxu0 0.0
      %519 = vmatprep.subr.mxu0 0.0
      %520 = vmatpush1.msra.mxu0 0.0
      %521 = vmatprep.subr.mxu0 0.0
      %522 = vmatpush1.msra.mxu0 0.0
      %523 = vmatprep.subr.mxu0 0.0
      %524 = vmatpush1.msra.mxu0 0.0
      %525 = vmatprep.subr.mxu0 0.0
      %526 = vmatpush1.msra.mxu0 0.0
      %527 = vmatprep.subr.mxu0 0.0
      %528 = vmatpush1.msra.mxu0 0.0
      %529 = vmatprep.subr.mxu0 0.0
      %530 = vmatpush1.msra.mxu0 0.0
      %531 = vmatprep.subr.mxu0 0.0
      %532 = vmatpush1.msra.mxu0 0.0
      %533 = vmatprep.subr.mxu0 0.0
      %534 = vmatpush1.msra.mxu0 0.0
      %535 = vmatprep.subr.mxu0 0.0
      %536 = vmatpush1.msra.mxu0 0.0
      %537 = vmatprep.subr.mxu0 0.0
      %538 = vmatpush1.msra.mxu0 0.0
      %539 = vmatprep.subr.mxu0 0.0
      %540 = vmatpush1.msra.mxu0 0.0
      %541 = vmatprep.subr.mxu0 0.0
      %542 = vmatpush1.msra.mxu0 0.0
      %543 = vmatprep.subr.mxu0 0.0
      %544 = vmatpush1.msra.mxu0 0.0
      %545 = vmatprep.mubr.f32.mxu0 0.0
      %v546 = vand.u32 %v204, 4294901760
      %v547 = vsub.f32 %v204, %v546
      %v548 = vand.u32 %v547, 4294901760
      %549 = vmatmul.mubr.f32.gmra.mrb[0].mxu0 %v548
      %v550 = vpop.f32.mrb[0].mxu0
      %v551 = vadd.f32 %v468, %v550
      %v552 = vpop.f32.mrb[0].mxu0
      %553 = vmatprep.mubr.f32.mxu0 0.0
      %v554 = vand.u32 %v207, 4294901760
      %v555 = vsub.f32 %v207, %v554
      %v556 = vand.u32 %v555, 4294901760
      %557 = vmatmul.mubr.f32.gmra.mrb[0].mxu0 %v556
      %v558 = vpop.f32.mrb[0].mxu0
      %v559 = vadd.f32 %v475, %v558
      %v560 = vpop.f32.mrb[0].mxu0
      %561 = vdwg.mxu0
      %562 = vmatprep.subr.mxu0 0.0
      %v563 = vand.u32 %v200, 4294901760
      %v564 = vsub.f32 %v200, %v563
      %v565 = vand.u32 %v564, 4294901760
      %566 = vmatpush1.msra.mxu0 %v565
      %567 = vmatprep.subr.mxu0 0.0
      %v568 = vand.u32 %v201, 4294901760
      %v569 = vsub.f32 %v201, %v568
      %v570 = vand.u32 %v569, 4294901760
      %571 = vmatpush1.msra.mxu0 %v570
      %572 = vmatprep.subr.mxu0 0.0
      %v573 = vand.u32 %v211, 4294901760
      %v574 = vsub.f32 %v211, %v573
      %v575 = vand.u32 %v574, 4294901760
      %576 = vmatpush1.msra.mxu0 %v575
      %577 = vmatprep.subr.mxu0 0.0
      %578 = vmatpush1.msra.mxu0 0.0
      %579 = vmatprep.subr.mxu0 0.0
      %580 = vmatpush1.msra.mxu0 0.0
      %581 = vmatprep.subr.mxu0 0.0
      %582 = vmatpush1.msra.mxu0 0.0
      %583 = vmatprep.subr.mxu0 0.0
      %584 = vmatpush1.msra.mxu0 0.0
      %585 = vmatprep.subr.mxu0 0.0
      %586 = vmatpush1.msra.mxu0 0.0
      %587 = vmatprep.subr.mxu0 0.0
      %588 = vmatpush1.msra.mxu0 0.0
      %589 = vmatprep.subr.mxu0 0.0
      %590 = vmatpush1.msra.mxu0 0.0
      %591 = vmatprep.subr.mxu0 0.0
      %592 = vmatpush1.msra.mxu0 0.0
      %593 = vmatprep.subr.mxu0 0.0
      %594 = vmatpush1.msra.mxu0 0.0
      %595 = vmatprep.subr.mxu0 0.0
      %596 = vmatpush1.msra.mxu0 0.0
      %597 = vmatprep.subr.mxu0 0.0
      %598 = vmatpush1.msra.mxu0 0.0
      %599 = vmatprep.subr.mxu0 0.0
      %600 = vmatpush1.msra.mxu0 0.0
      %601 = vmatprep.subr.mxu0 0.0
      %602 = vmatpush1.msra.mxu0 0.0
      %603 = vmatprep.subr.mxu0 0.0
      %604 = vmatpush1.msra.mxu0 0.0
      %605 = vmatprep.subr.mxu0 0.0
      %606 = vmatpush1.msra.mxu0 0.0
      %607 = vmatprep.subr.mxu0 0.0
      %608 = vmatpush1.msra.mxu0 0.0
      %609 = vmatprep.subr.mxu0 0.0
      %610 = vmatpush1.msra.mxu0 0.0
      %611 = vmatprep.subr.mxu0 0.0
      %612 = vmatpush1.msra.mxu0 0.0
      %613 = vmatprep.subr.mxu0 0.0
      %614 = vmatpush1.msra.mxu0 0.0
      %615 = vmatprep.subr.mxu0 0.0
      %616 = vmatpush1.msra.mxu0 0.0
      %617 = vmatprep.subr.mxu0 0.0
      %618 = vmatpush1.msra.mxu0 0.0
      %619 = vmatprep.subr.mxu0 0.0
      %620 = vmatpush1.msra.mxu0 0.0
      %621 = vmatprep.subr.mxu0 0.0
      %622 = vmatpush1.msra.mxu0 0.0
      %623 = vmatprep.subr.mxu0 0.0
      %624 = vmatpush1.msra.mxu0 0.0
      %625 = vmatprep.subr.mxu0 0.0
      %626 = vmatpush1.msra.mxu0 0.0
      %627 = vmatprep.subr.mxu0 0.0
      %628 = vmatpush1.msra.mxu0 0.0
      %629 = vmatprep.subr.mxu0 0.0
      %630 = vmatpush1.msra.mxu0 0.0
      %631 = vmatprep.subr.mxu0 0.0
      %632 = vmatpush1.msra.mxu0 0.0
      %633 = vmatprep.subr.mxu0 0.0
      %634 = vmatpush1.msra.mxu0 0.0
      %635 = vmatprep.mubr.f32.mxu0 0.0
      %v636 = vand.u32 %v204, 4294901760
      %637 = vmatmul.mubr.f32.gmra.mrb[0].mxu0 %v636
      %v638 = vpop.f32.mrb[0].mxu0
      %v639 = vadd.f32 %v551, %v638
      %v640 = vpop.f32.mrb[0].mxu0
      %641 = vmatprep.mubr.f32.mxu0 0.0
      %v642 = vand.u32 %v207, 4294901760
      %643 = vmatmul.mubr.f32.gmra.mrb[0].mxu0 %v642
      %v644 = vpop.f32.mrb[0].mxu0
      %v645 = vadd.f32 %v559, %v644
      %v646 = vpop.f32.mrb[0].mxu0
      %647 = vdwg.mxu0
      %648 = vmatprep.subr.mxu0 0.0
      %v649 = vand.u32 %v200, 4294901760
      %650 = vmatpush1.msra.mxu0 %v649
      %651 = vmatprep.subr.mxu0 0.0
      %v652 = vand.u32 %v201, 4294901760
      %653 = vmatpush1.msra.mxu0 %v652
      %654 = vmatprep.subr.mxu0 0.0
      %v655 = vand.u32 %v211, 4294901760
      %656 = vmatpush1.msra.mxu0 %v655
      %657 = vmatprep.subr.mxu0 0.0
      %658 = vmatpush1.msra.mxu0 0.0
      %659 = vmatprep.subr.mxu0 0.0
      %660 = vmatpush1.msra.mxu0 0.0
      %661 = vmatprep.subr.mxu0 0.0
      %662 = vmatpush1.msra.mxu0 0.0
      %663 = vmatprep.subr.mxu0 0.0
      %664 = vmatpush1.msra.mxu0 0.0
      %665 = vmatprep.subr.mxu0 0.0
      %666 = vmatpush1.msra.mxu0 0.0
      %667 = vmatprep.subr.mxu0 0.0
      %668 = vmatpush1.msra.mxu0 0.0
      %669 = vmatprep.subr.mxu0 0.0
      %670 = vmatpush1.msra.mxu0 0.0
      %671 = vmatprep.subr.mxu0 0.0
      %672 = vmatpush1.msra.mxu0 0.0
      %673 = vmatprep.subr.mxu0 0.0
      %674 = vmatpush1.msra.mxu0 0.0
      %675 = vmatprep.subr.mxu0 0.0
      %676 = vmatpush1.msra.mxu0 0.0
      %677 = vmatprep.subr.mxu0 0.0
      %678 = vmatpush1.msra.mxu0 0.0
      %679 = vmatprep.subr.mxu0 0.0
      %680 = vmatpush1.msra.mxu0 0.0
      %681 = vmatprep.subr.mxu0 0.0
      %682 = vmatpush1.msra.mxu0 0.0
      %683 = vmatprep.subr.mxu0 0.0
      %684 = vmatpush1.msra.mxu0 0.0
      %685 = vmatprep.subr.mxu0 0.0
      %686 = vmatpush1.msra.mxu0 0.0
      %687 = vmatprep.subr.mxu0 0.0
      %688 = vmatpush1.msra.mxu0 0.0
      %689 = vmatprep.subr.mxu0 0.0
      %690 = vmatpush1.msra.mxu0 0.0
      %691 = vmatprep.subr.mxu0 0.0
      %692 = vmatpush1.msra.mxu0 0.0
      %693 = vmatprep.subr.mxu0 0.0
      %694 = vmatpush1.msra.mxu0 0.0
      %695 = vmatprep.subr.mxu0 0.0
      %696 = vmatpush1.msra.mxu0 0.0
      %697 = vmatprep.subr.mxu0 0.0
      %698 = vmatpush1.msra.mxu0 0.0
      %699 = vmatprep.subr.mxu0 0.0
      %700 = vmatpush1.msra.mxu0 0.0
      %701 = vmatprep.subr.mxu0 0.0
      %702 = vmatpush1.msra.mxu0 0.0
      %703 = vmatprep.subr.mxu0 0.0
      %704 = vmatpush1.msra.mxu0 0.0
      %705 = vmatprep.subr.mxu0 0.0
      %706 = vmatpush1.msra.mxu0 0.0
      %707 = vmatprep.subr.mxu0 0.0
      %708 = vmatpush1.msra.mxu0 0.0
      %709 = vmatprep.subr.mxu0 0.0
      %710 = vmatpush1.msra.mxu0 0.0
      %711 = vmatprep.subr.mxu0 0.0
      %712 = vmatpush1.msra.mxu0 0.0
      %713 = vmatprep.subr.mxu0 0.0
      %714 = vmatpush1.msra.mxu0 0.0
      %715 = vmatprep.mubr.f32.mxu0 0.0
      %v716 = vand.u32 %v204, 4294901760
      %717 = vmatmul.mubr.f32.gmra.mrb[0].mxu0 %v716
      %v718 = vpop.f32.mrb[0].mxu0
      %v719 = vadd.f32 %v639, %v718
      %v720 = vpop.f32.mrb[0].mxu0
      %721 = vmatprep.mubr.f32.mxu0 0.0
      %v722 = vand.u32 %v207, 4294901760
      %723 = vmatmul.mubr.f32.gmra.mrb[0].mxu0 %v722
      %v724 = vpop.f32.mrb[0].mxu0
      %v725 = vadd.f32 %v645, %v724
      %v726 = vpop.f32.mrb[0].mxu0
      %727 = vdwg.mxu0
      %v729 = vsel %vm171, %v198, 0
      %v732 = vsel %vm171, %v199, 0
      %734 = vmatprep.subr.mxu0 0.0
      %v735 = vand.u32 %v200, 4294901760
      %736 = vmatpush1.msra.mxu0 %v735
      %737 = vmatprep.subr.mxu0 0.0
      %v738 = vand.u32 %v201, 4294901760
      %739 = vmatpush1.msra.mxu0 %v738
      %740 = vmatprep.subr.mxu0 0.0
      %v741 = vand.u32 %v211, 4294901760
      %742 = vmatpush1.msra.mxu0 %v741
      %743 = vmatprep.subr.mxu0 0.0
      %744 = vmatpush1.msra.mxu0 0.0
      %745 = vmatprep.subr.mxu0 0.0
      %746 = vmatpush1.msra.mxu0 0.0
      %747 = vmatprep.subr.mxu0 0.0
      %748 = vmatpush1.msra.mxu0 0.0
      %749 = vmatprep.subr.mxu0 0.0
      %750 = vmatpush1.msra.mxu0 0.0
      %751 = vmatprep.subr.mxu0 0.0
      %752 = vmatpush1.msra.mxu0 0.0
      %753 = vmatprep.subr.mxu0 0.0
      %754 = vmatpush1.msra.mxu0 0.0
      %755 = vmatprep.subr.mxu0 0.0
      %756 = vmatpush1.msra.mxu0 0.0
      %757 = vmatprep.subr.mxu0 0.0
      %758 = vmatpush1.msra.mxu0 0.0
      %759 = vmatprep.subr.mxu0 0.0
      %760 = vmatpush1.msra.mxu0 0.0
      %761 = vmatprep.subr.mxu0 0.0
      %762 = vmatpush1.msra.mxu0 0.0
      %763 = vmatprep.subr.mxu0 0.0
      %764 = vmatpush1.msra.mxu0 0.0
      %765 = vmatprep.subr.mxu0 0.0
      %766 = vmatpush1.msra.mxu0 0.0
      %767 = vmatprep.subr.mxu0 0.0
      %768 = vmatpush1.msra.mxu0 0.0
      %769 = vmatprep.subr.mxu0 0.0
      %770 = vmatpush1.msra.mxu0 0.0
      %771 = vmatprep.subr.mxu0 0.0
      %772 = vmatpush1.msra.mxu0 0.0
      %773 = vmatprep.subr.mxu0 0.0
      %774 = vmatpush1.msra.mxu0 0.0
      %775 = vmatprep.subr.mxu0 0.0
      %776 = vmatpush1.msra.mxu0 0.0
      %777 = vmatprep.subr.mxu0 0.0
      %778 = vmatpush1.msra.mxu0 0.0
      %779 = vmatprep.subr.mxu0 0.0
      %780 = vmatpush1.msra.mxu0 0.0
      %781 = vmatprep.subr.mxu0 0.0
      %782 = vmatpush1.msra.mxu0 0.0
      %783 = vmatprep.subr.mxu0 0.0
      %784 = vmatpush1.msra.mxu0 0.0
      %785 = vmatprep.subr.mxu0 0.0
      %786 = vmatpush1.msra.mxu0 0.0
      %787 = vmatprep.subr.mxu0 0.0
      %788 = vmatpush1.msra.mxu0 0.0
      %789 = vmatprep.subr.mxu0 0.0
      %790 = vmatpush1.msra.mxu0 0.0
      %791 = vmatprep.subr.mxu0 0.0
      %792 = vmatpush1.msra.mxu0 0.0
      %793 = vmatprep.subr.mxu0 0.0
      %794 = vmatpush1.msra.mxu0 0.0
      %795 = vmatprep.subr.mxu0 0.0
      %796 = vmatpush1.msra.mxu0 0.0
      %797 = vmatprep.subr.mxu0 0.0
      %798 = vmatpush1.msra.mxu0 0.0
      %799 = vmatprep.subr.mxu0 0.0
      %800 = vmatpush1.msra.mxu0 0.0
      %801 = vmatprep.mubr.f32.mxu0 0.0
      %v802 = vand.u32 %v729, 4294901760
      %v803 = vsub.f32 %v729, %v802
      %v804 = vand.u32 %v803, 4294901760
      %v805 = vsub.f32 %v803, %v804
      %v806 = vand.u32 %v805, 4294901760
      %807 = vmatmul.mubr.f32.gmra.mrb[0].mxu0 %v806
      %v808 = vpop.f32.mrb[0].mxu0
      %v809 = vadd.f32 0.0, %v808
      %v810 = vpop.f32.mrb[0].mxu0
      %811 = vmatprep.mubr.f32.mxu0 0.0
      %v812 = vand.u32 %v732, 4294901760
      %v813 = vsub.f32 %v732, %v812
      %v814 = vand.u32 %v813, 4294901760
      %v815 = vsub.f32 %v813, %v814
      %v816 = vand.u32 %v815, 4294901760
      %817 = vmatmul.mubr.f32.gmra.mrb[0].mxu0 %v816
      %v818 = vpop.f32.mrb[0].mxu0
      %v819 = vadd.f32 0.0, %v818
      %v820 = vpop.f32.mrb[0].mxu0
      %821 = vdwg.mxu0
      %822 = vmatprep.subr.mxu0 0.0
      %v823 = vand.u32 %v200, 4294901760
      %v824 = vsub.f32 %v200, %v823
      %v825 = vand.u32 %v824, 4294901760
      %v826 = vsub.f32 %v824, %v825
      %v827 = vand.u32 %v826, 4294901760
      %828 = vmatpush1.msra.mxu0 %v827
      %829 = vmatprep.subr.mxu0 0.0
      %v830 = vand.u32 %v201, 4294901760
      %v831 = vsub.f32 %v201, %v830
      %v832 = vand.u32 %v831, 4294901760
      %v833 = vsub.f32 %v831, %v832
      %v834 = vand.u32 %v833, 4294901760
      %835 = vmatpush1.msra.mxu0 %v834
      %836 = vmatprep.subr.mxu0 0.0
      %v837 = vand.u32 %v211, 4294901760
      %v838 = vsub.f32 %v211, %v837
      %v839 = vand.u32 %v838, 4294901760
      %v840 = vsub.f32 %v838, %v839
      %v841 = vand.u32 %v840, 4294901760
      %842 = vmatpush1.msra.mxu0 %v841
      %843 = vmatprep.subr.mxu0 0.0
      %844 = vmatpush1.msra.mxu0 0.0
      %845 = vmatprep.subr.mxu0 0.0
      %846 = vmatpush1.msra.mxu0 0.0
      %847 = vmatprep.subr.mxu0 0.0
      %848 = vmatpush1.msra.mxu0 0.0
      %849 = vmatprep.subr.mxu0 0.0
      %850 = vmatpush1.msra.mxu0 0.0
      %851 = vmatprep.subr.mxu0 0.0
      %852 = vmatpush1.msra.mxu0 0.0
      %853 = vmatprep.subr.mxu0 0.0
      %854 = vmatpush1.msra.mxu0 0.0
      %855 = vmatprep.subr.mxu0 0.0
      %856 = vmatpush1.msra.mxu0 0.0
      %857 = vmatprep.subr.mxu0 0.0
      %858 = vmatpush1.msra.mxu0 0.0
      %859 = vmatprep.subr.mxu0 0.0
      %860 = vmatpush1.msra.mxu0 0.0
      %861 = vmatprep.subr.mxu0 0.0
      %862 = vmatpush1.msra.mxu0 0.0
      %863 = vmatprep.subr.mxu0 0.0
      %864 = vmatpush1.msra.mxu0 0.0
      %865 = vmatprep.subr.mxu0 0.0
      %866 = vmatpush1.msra.mxu0 0.0
      %867 = vmatprep.subr.mxu0 0.0
      %868 = vmatpush1.msra.mxu0 0.0
      %869 = vmatprep.subr.mxu0 0.0
      %870 = vmatpush1.msra.mxu0 0.0
      %871 = vmatprep.subr.mxu0 0.0
      %872 = vmatpush1.msra.mxu0 0.0
      %873 = vmatprep.subr.mxu0 0.0
      %874 = vmatpush1.msra.mxu0 0.0
      %875 = vmatprep.subr.mxu0 0.0
      %876 = vmatpush1.msra.mxu0 0.0
      %877 = vmatprep.subr.mxu0 0.0
      %878 = vmatpush1.msra.mxu0 0.0
      %879 = vmatprep.subr.mxu0 0.0
      %880 = vmatpush1.msra.mxu0 0.0
      %881 = vmatprep.subr.mxu0 0.0
      %882 = vmatpush1.msra.mxu0 0.0
      %883 = vmatprep.subr.mxu0 0.0
      %884 = vmatpush1.msra.mxu0 0.0
      %885 = vmatprep.subr.mxu0 0.0
      %886 = vmatpush1.msra.mxu0 0.0
      %887 = vmatprep.subr.mxu0 0.0
      %888 = vmatpush1.msra.mxu0 0.0
      %889 = vmatprep.subr.mxu0 0.0
      %890 = vmatpush1.msra.mxu0 0.0
      %891 = vmatprep.subr.mxu0 0.0
      %892 = vmatpush1.msra.mxu0 0.0
      %893 = vmatprep.subr.mxu0 0.0
      %894 = vmatpush1.msra.mxu0 0.0
      %895 = vmatprep.subr.mxu0 0.0
      %896 = vmatpush1.msra.mxu0 0.0
      %897 = vmatprep.subr.mxu0 0.0
      %898 = vmatpush1.msra.mxu0 0.0
      %899 = vmatprep.subr.mxu0 0.0
      %900 = vmatpush1.msra.mxu0 0.0
      %901 = vmatprep.mubr.f32.mxu0 0.0
      %v902 = vand.u32 %v729, 4294901760
      %903 = vmatmul.mubr.f32.gmra.mrb[0].mxu0 %v902
      %v904 = vpop.f32.mrb[0].mxu0
      %v905 = vadd.f32 %v809, %v904
      %v906 = vpop.f32.mrb[0].mxu0
      %907 = vmatprep.mubr.f32.mxu0 0.0
      %v908 = vand.u32 %v732, 4294901760
      %909 = vmatmul.mubr.f32.gmra.mrb[0].mxu0 %v908
      %v910 = vpop.f32.mrb[0].mxu0
      %v911 = vadd.f32 %v819, %v910
      %v912 = vpop.f32.mrb[0].mxu0
      %913 = vdwg.mxu0
      %914 = vmatprep.subr.mxu0 0.0
      %v915 = vand.u32 %v200, 4294901760
      %v916 = vsub.f32 %v200, %v915
      %917 = vmatpush1.msra.mxu0 %v916
      %918 = vmatprep.subr.mxu0 0.0
      %v919 = vand.u32 %v201, 4294901760
      %v920 = vsub.f32 %v201, %v919
      %921 = vmatpush1.msra.mxu0 %v920
      %922 = vmatprep.subr.mxu0 0.0
      %v923 = vand.u32 %v211, 4294901760
      %v924 = vsub.f32 %v211, %v923
      %925 = vmatpush1.msra.mxu0 %v924
      %926 = vmatprep.subr.mxu0 0.0
      %927 = vmatpush1.msra.mxu0 0.0
      %928 = vmatprep.subr.mxu0 0.0
      %929 = vmatpush1.msra.mxu0 0.0
      %930 = vmatprep.subr.mxu0 0.0
      %931 = vmatpush1.msra.mxu0 0.0
      %932 = vmatprep.subr.mxu0 0.0
      %933 = vmatpush1.msra.mxu0 0.0
      %934 = vmatprep.subr.mxu0 0.0
      %935 = vmatpush1.msra.mxu0 0.0
      %936 = vmatprep.subr.mxu0 0.0
      %937 = vmatpush1.msra.mxu0 0.0
      %938 = vmatprep.subr.mxu0 0.0
      %939 = vmatpush1.msra.mxu0 0.0
      %940 = vmatprep.subr.mxu0 0.0
      %941 = vmatpush1.msra.mxu0 0.0
      %942 = vmatprep.subr.mxu0 0.0
      %943 = vmatpush1.msra.mxu0 0.0
      %944 = vmatprep.subr.mxu0 0.0
      %945 = vmatpush1.msra.mxu0 0.0
      %946 = vmatprep.subr.mxu0 0.0
      %947 = vmatpush1.msra.mxu0 0.0
      %948 = vmatprep.subr.mxu0 0.0
      %949 = vmatpush1.msra.mxu0 0.0
      %950 = vmatprep.subr.mxu0 0.0
      %951 = vmatpush1.msra.mxu0 0.0
      %952 = vmatprep.subr.mxu0 0.0
      %953 = vmatpush1.msra.mxu0 0.0
      %954 = vmatprep.subr.mxu0 0.0
      %955 = vmatpush1.msra.mxu0 0.0
      %956 = vmatprep.subr.mxu0 0.0
      %957 = vmatpush1.msra.mxu0 0.0
      %958 = vmatprep.subr.mxu0 0.0
      %959 = vmatpush1.msra.mxu0 0.0
      %960 = vmatprep.subr.mxu0 0.0
      %961 = vmatpush1.msra.mxu0 0.0
      %962 = vmatprep.subr.mxu0 0.0
      %963 = vmatpush1.msra.mxu0 0.0
      %964 = vmatprep.subr.mxu0 0.0
      %965 = vmatpush1.msra.mxu0 0.0
      %966 = vmatprep.subr.mxu0 0.0
      %967 = vmatpush1.msra.mxu0 0.0
      %968 = vmatprep.subr.mxu0 0.0
      %969 = vmatpush1.msra.mxu0 0.0
      %970 = vmatprep.subr.mxu0 0.0
      %971 = vmatpush1.msra.mxu0 0.0
      %972 = vmatprep.subr.mxu0 0.0
      %973 = vmatpush1.msra.mxu0 0.0
      %974 = vmatprep.subr.mxu0 0.0
      %975 = vmatpush1.msra.mxu0 0.0
      %976 = vmatprep.subr.mxu0 0.0
      %977 = vmatpush1.msra.mxu0 0.0
      %978 = vmatprep.subr.mxu0 0.0
      %979 = vmatpush1.msra.mxu0 0.0
      %980 = vmatprep.subr.mxu0 0.0
      %981 = vmatpush1.msra.mxu0 0.0
      %982 = vmatprep.subr.mxu0 0.0
      %983 = vmatpush1.msra.mxu0 0.0
      %984 = vmatprep.mubr.f32.mxu0 0.0
      %v985 = vand.u32 %v729, 4294901760
      %v986 = vsub.f32 %v729, %v985
      %987 = vmatmul.mubr.f32.gmra.mrb[0].mxu0 %v986
      %v988 = vpop.f32.mrb[0].mxu0
      %v989 = vadd.f32 %v905, %v988
      %v990 = vpop.f32.mrb[0].mxu0
      %991 = vmatprep.mubr.f32.mxu0 0.0
      %v992 = vand.u32 %v732, 4294901760
      %v993 = vsub.f32 %v732, %v992
      %994 = vmatmul.mubr.f32.gmra.mrb[0].mxu0 %v993
      %v995 = vpop.f32.mrb[0].mxu0
      %v996 = vadd.f32 %v911, %v995
      %v997 = vpop.f32.mrb[0].mxu0
      %998 = vdwg.mxu0
      %999 = vmatprep.subr.mxu0 0.0
      %v1000 = vand.u32 %v200, 4294901760
      %1001 = vmatpush1.msra.mxu0 %v1000
      %1002 = vmatprep.subr.mxu0 0.0
      %v1003 = vand.u32 %v201, 4294901760
      %1004 = vmatpush1.msra.mxu0 %v1003
      %1005 = vmatprep.subr.mxu0 0.0
      %v1006 = vand.u32 %v211, 4294901760
      %1007 = vmatpush1.msra.mxu0 %v1006
      %1008 = vmatprep.subr.mxu0 0.0
      %1009 = vmatpush1.msra.mxu0 0.0
      %1010 = vmatprep.subr.mxu0 0.0
      %1011 = vmatpush1.msra.mxu0 0.0
      %1012 = vmatprep.subr.mxu0 0.0
      %1013 = vmatpush1.msra.mxu0 0.0
      %1014 = vmatprep.subr.mxu0 0.0
      %1015 = vmatpush1.msra.mxu0 0.0
      %1016 = vmatprep.subr.mxu0 0.0
      %1017 = vmatpush1.msra.mxu0 0.0
      %1018 = vmatprep.subr.mxu0 0.0
      %1019 = vmatpush1.msra.mxu0 0.0
      %1020 = vmatprep.subr.mxu0 0.0
      %1021 = vmatpush1.msra.mxu0 0.0
      %1022 = vmatprep.subr.mxu0 0.0
      %1023 = vmatpush1.msra.mxu0 0.0
      %1024 = vmatprep.subr.mxu0 0.0
      %1025 = vmatpush1.msra.mxu0 0.0
      %1026 = vmatprep.subr.mxu0 0.0
      %1027 = vmatpush1.msra.mxu0 0.0
      %1028 = vmatprep.subr.mxu0 0.0
      %1029 = vmatpush1.msra.mxu0 0.0
      %1030 = vmatprep.subr.mxu0 0.0
      %1031 = vmatpush1.msra.mxu0 0.0
      %1032 = vmatprep.subr.mxu0 0.0
      %1033 = vmatpush1.msra.mxu0 0.0
      %1034 = vmatprep.subr.mxu0 0.0
      %1035 = vmatpush1.msra.mxu0 0.0
      %1036 = vmatprep.subr.mxu0 0.0
      %1037 = vmatpush1.msra.mxu0 0.0
      %1038 = vmatprep.subr.mxu0 0.0
      %1039 = vmatpush1.msra.mxu0 0.0
      %1040 = vmatprep.subr.mxu0 0.0
      %1041 = vmatpush1.msra.mxu0 0.0
      %1042 = vmatprep.subr.mxu0 0.0
      %1043 = vmatpush1.msra.mxu0 0.0
      %1044 = vmatprep.subr.mxu0 0.0
      %1045 = vmatpush1.msra.mxu0 0.0
      %1046 = vmatprep.subr.mxu0 0.0
      %1047 = vmatpush1.msra.mxu0 0.0
      %1048 = vmatprep.subr.mxu0 0.0
      %1049 = vmatpush1.msra.mxu0 0.0
      %1050 = vmatprep.subr.mxu0 0.0
      %1051 = vmatpush1.msra.mxu0 0.0
      %1052 = vmatprep.subr.mxu0 0.0
      %1053 = vmatpush1.msra.mxu0 0.0
      %1054 = vmatprep.subr.mxu0 0.0
      %1055 = vmatpush1.msra.mxu0 0.0
      %1056 = vmatprep.subr.mxu0 0.0
      %1057 = vmatpush1.msra.mxu0 0.0
      %1058 = vmatprep.subr.mxu0 0.0
      %1059 = vmatpush1.msra.mxu0 0.0
      %1060 = vmatprep.subr.mxu0 0.0
      %1061 = vmatpush1.msra.mxu0 0.0
      %1062 = vmatprep.subr.mxu0 0.0
      %1063 = vmatpush1.msra.mxu0 0.0
      %1064 = vmatprep.subr.mxu0 0.0
      %1065 = vmatpush1.msra.mxu0 0.0
      %1066 = vmatprep.mubr.f32.mxu0 0.0
      %v1067 = vand.u32 %v729, 4294901760
      %v1068 = vsub.f32 %v729, %v1067
      %v1069 = vand.u32 %v1068, 4294901760
      %1070 = vmatmul.mubr.f32.gmra.mrb[0].mxu0 %v1069
      %v1071 = vpop.f32.mrb[0].mxu0
      %v1072 = vadd.f32 %v989, %v1071
      %v1073 = vpop.f32.mrb[0].mxu0
      %1074 = vmatprep.mubr.f32.mxu0 0.0
      %v1075 = vand.u32 %v732, 4294901760
      %v1076 = vsub.f32 %v732, %v1075
      %v1077 = vand.u32 %v1076, 4294901760
      %1078 = vmatmul.mubr.f32.gmra.mrb[0].mxu0 %v1077
      %v1079 = vpop.f32.mrb[0].mxu0
      %v1080 = vadd.f32 %v996, %v1079
      %v1081 = vpop.f32.mrb[0].mxu0
      %1082 = vdwg.mxu0
      %1083 = vmatprep.subr.mxu0 0.0
      %v1084 = vand.u32 %v200, 4294901760
      %v1085 = vsub.f32 %v200, %v1084
      %v1086 = vand.u32 %v1085, 4294901760
      %1087 = vmatpush1.msra.mxu0 %v1086
      %1088 = vmatprep.subr.mxu0 0.0
      %v1089 = vand.u32 %v201, 4294901760
      %v1090 = vsub.f32 %v201, %v1089
      %v1091 = vand.u32 %v1090, 4294901760
      %1092 = vmatpush1.msra.mxu0 %v1091
      %1093 = vmatprep.subr.mxu0 0.0
      %v1094 = vand.u32 %v211, 4294901760
      %v1095 = vsub.f32 %v211, %v1094
      %v1096 = vand.u32 %v1095, 4294901760
      %1097 = vmatpush1.msra.mxu0 %v1096
      %1098 = vmatprep.subr.mxu0 0.0
      %1099 = vmatpush1.msra.mxu0 0.0
      %1100 = vmatprep.subr.mxu0 0.0
      %1101 = vmatpush1.msra.mxu0 0.0
      %1102 = vmatprep.subr.mxu0 0.0
      %1103 = vmatpush1.msra.mxu0 0.0
      %1104 = vmatprep.subr.mxu0 0.0
      %1105 = vmatpush1.msra.mxu0 0.0
      %1106 = vmatprep.subr.mxu0 0.0
      %1107 = vmatpush1.msra.mxu0 0.0
      %1108 = vmatprep.subr.mxu0 0.0
      %1109 = vmatpush1.msra.mxu0 0.0
      %1110 = vmatprep.subr.mxu0 0.0
      %1111 = vmatpush1.msra.mxu0 0.0
      %1112 = vmatprep.subr.mxu0 0.0
      %1113 = vmatpush1.msra.mxu0 0.0
      %1114 = vmatprep.subr.mxu0 0.0
      %1115 = vmatpush1.msra.mxu0 0.0
      %1116 = vmatprep.subr.mxu0 0.0
      %1117 = vmatpush1.msra.mxu0 0.0
      %1118 = vmatprep.subr.mxu0 0.0
      %1119 = vmatpush1.msra.mxu0 0.0
      %1120 = vmatprep.subr.mxu0 0.0
      %1121 = vmatpush1.msra.mxu0 0.0
      %1122 = vmatprep.subr.mxu0 0.0
      %1123 = vmatpush1.msra.mxu0 0.0
      %1124 = vmatprep.subr.mxu0 0.0
      %1125 = vmatpush1.msra.mxu0 0.0
      %1126 = vmatprep.subr.mxu0 0.0
      %1127 = vmatpush1.msra.mxu0 0.0
      %1128 = vmatprep.subr.mxu0 0.0
      %1129 = vmatpush1.msra.mxu0 0.0
      %1130 = vmatprep.subr.mxu0 0.0
      %1131 = vmatpush1.msra.mxu0 0.0
      %1132 = vmatprep.subr.mxu0 0.0
      %1133 = vmatpush1.msra.mxu0 0.0
      %1134 = vmatprep.subr.mxu0 0.0
      %1135 = vmatpush1.msra.mxu0 0.0
      %1136 = vmatprep.subr.mxu0 0.0
      %1137 = vmatpush1.msra.mxu0 0.0
      %1138 = vmatprep.subr.mxu0 0.0
      %1139 = vmatpush1.msra.mxu0 0.0
      %1140 = vmatprep.subr.mxu0 0.0
      %1141 = vmatpush1.msra.mxu0 0.0
      %1142 = vmatprep.subr.mxu0 0.0
      %1143 = vmatpush1.msra.mxu0 0.0
      %1144 = vmatprep.subr.mxu0 0.0
      %1145 = vmatpush1.msra.mxu0 0.0
      %1146 = vmatprep.subr.mxu0 0.0
      %1147 = vmatpush1.msra.mxu0 0.0
      %1148 = vmatprep.subr.mxu0 0.0
      %1149 = vmatpush1.msra.mxu0 0.0
      %1150 = vmatprep.subr.mxu0 0.0
      %1151 = vmatpush1.msra.mxu0 0.0
      %1152 = vmatprep.subr.mxu0 0.0
      %1153 = vmatpush1.msra.mxu0 0.0
      %1154 = vmatprep.subr.mxu0 0.0
      %1155 = vmatpush1.msra.mxu0 0.0
      %1156 = vmatprep.mubr.f32.mxu0 0.0
      %v1157 = vand.u32 %v729, 4294901760
      %1158 = vmatmul.mubr.f32.gmra.mrb[0].mxu0 %v1157
      %v1159 = vpop.f32.mrb[0].mxu0
      %v1160 = vadd.f32 %v1072, %v1159
      %v1161 = vpop.f32.mrb[0].mxu0
      %1162 = vmatprep.mubr.f32.mxu0 0.0
      %v1163 = vand.u32 %v732, 4294901760
      %1164 = vmatmul.mubr.f32.gmra.mrb[0].mxu0 %v1163
      %v1165 = vpop.f32.mrb[0].mxu0
      %v1166 = vadd.f32 %v1080, %v1165
      %v1167 = vpop.f32.mrb[0].mxu0
      %1168 = vdwg.mxu0
      %1169 = vmatprep.subr.mxu0 0.0
      %v1170 = vand.u32 %v200, 4294901760
      %1171 = vmatpush1.msra.mxu0 %v1170
      %1172 = vmatprep.subr.mxu0 0.0
      %v1173 = vand.u32 %v201, 4294901760
      %1174 = vmatpush1.msra.mxu0 %v1173
      %1175 = vmatprep.subr.mxu0 0.0
      %v1176 = vand.u32 %v211, 4294901760
      %1177 = vmatpush1.msra.mxu0 %v1176
      %1178 = vmatprep.subr.mxu0 0.0
      %1179 = vmatpush1.msra.mxu0 0.0
      %1180 = vmatprep.subr.mxu0 0.0
      %1181 = vmatpush1.msra.mxu0 0.0
      %1182 = vmatprep.subr.mxu0 0.0
      %1183 = vmatpush1.msra.mxu0 0.0
      %1184 = vmatprep.subr.mxu0 0.0
      %1185 = vmatpush1.msra.mxu0 0.0
      %1186 = vmatprep.subr.mxu0 0.0
      %1187 = vmatpush1.msra.mxu0 0.0
      %1188 = vmatprep.subr.mxu0 0.0
      %1189 = vmatpush1.msra.mxu0 0.0
      %1190 = vmatprep.subr.mxu0 0.0
      %1191 = vmatpush1.msra.mxu0 0.0
      %1192 = vmatprep.subr.mxu0 0.0
      %1193 = vmatpush1.msra.mxu0 0.0
      %1194 = vmatprep.subr.mxu0 0.0
      %1195 = vmatpush1.msra.mxu0 0.0
      %1196 = vmatprep.subr.mxu0 0.0
      %1197 = vmatpush1.msra.mxu0 0.0
      %1198 = vmatprep.subr.mxu0 0.0
      %1199 = vmatpush1.msra.mxu0 0.0
      %1200 = vmatprep.subr.mxu0 0.0
      %1201 = vmatpush1.msra.mxu0 0.0
      %1202 = vmatprep.subr.mxu0 0.0
      %1203 = vmatpush1.msra.mxu0 0.0
      %1204 = vmatprep.subr.mxu0 0.0
      %1205 = vmatpush1.msra.mxu0 0.0
      %1206 = vmatprep.subr.mxu0 0.0
      %1207 = vmatpush1.msra.mxu0 0.0
      %1208 = vmatprep.subr.mxu0 0.0
      %1209 = vmatpush1.msra.mxu0 0.0
      %1210 = vmatprep.subr.mxu0 0.0
      %1211 = vmatpush1.msra.mxu0 0.0
      %1212 = vmatprep.subr.mxu0 0.0
      %1213 = vmatpush1.msra.mxu0 0.0
      %1214 = vmatprep.subr.mxu0 0.0
      %1215 = vmatpush1.msra.mxu0 0.0
      %1216 = vmatprep.subr.mxu0 0.0
      %1217 = vmatpush1.msra.mxu0 0.0
      %1218 = vmatprep.subr.mxu0 0.0
      %1219 = vmatpush1.msra.mxu0 0.0
      %1220 = vmatprep.subr.mxu0 0.0
      %1221 = vmatpush1.msra.mxu0 0.0
      %1222 = vmatprep.subr.mxu0 0.0
      %1223 = vmatpush1.msra.mxu0 0.0
      %1224 = vmatprep.subr.mxu0 0.0
      %1225 = vmatpush1.msra.mxu0 0.0
      %1226 = vmatprep.subr.mxu0 0.0
      %1227 = vmatpush1.msra.mxu0 0.0
      %1228 = vmatprep.subr.mxu0 0.0
      %1229 = vmatpush1.msra.mxu0 0.0
      %1230 = vmatprep.subr.mxu0 0.0
      %1231 = vmatpush1.msra.mxu0 0.0
      %1232 = vmatprep.subr.mxu0 0.0
      %1233 = vmatpush1.msra.mxu0 0.0
      %1234 = vmatprep.subr.mxu0 0.0
      %1235 = vmatpush1.msra.mxu0 0.0
      %1236 = vmatprep.mubr.f32.mxu0 0.0
      %v1237 = vand.u32 %v729, 4294901760
      %1238 = vmatmul.mubr.f32.gmra.mrb[0].mxu0 %v1237
      %v1239 = vpop.f32.mrb[0].mxu0
      %v1240 = vadd.f32 %v1160, %v1239
      %v1241 = vpop.f32.mrb[0].mxu0
      %1242 = vmatprep.mubr.f32.mxu0 0.0
      %v1243 = vand.u32 %v732, 4294901760
      %1244 = vmatmul.mubr.f32.gmra.mrb[0].mxu0 %v1243
      %v1245 = vpop.f32.mrb[0].mxu0
      %v1246 = vadd.f32 %v1166, %v1245
      %v1247 = vpop.f32.mrb[0].mxu0
      %1248 = vdwg.mxu0
      %1251 = vrot.lane.b32.xlu0 %v719, 92
      %v1252 = vpop.permute.xlu0 %1251
      %1253 = vrot.lane.b32.xlu0 %v725, 92
      %v1254 = vpop.permute.xlu0 %1253
      %v1257 = vmax.f32 %v719, %v1252
      %v1258 = vmax.f32 %v725, %v1254
      %1261 = vrot.lane.b32.xlu0 %v1240, 92
      %v1262 = vpop.permute.xlu0 %1261
      %1263 = vrot.lane.b32.xlu0 %v1246, 92
      %v1264 = vpop.permute.xlu0 %1263
      %v1267 = vmin.f32 %v1240, %v1262
      %v1268 = vmin.f32 %v1246, %v1264
      %v1269 = vld [vmem:[%s0] sm:$0x1]
      %v1270 = vlaneseq
      %v1271 = vshrl.u32 %v1270, 7
      %v1272 = vsub.s32 0, %v1271
      %v1273 = vrot.slane %v1269, %v1272
      %v1274 = vld [vmem:[%s0 + $0x1] sm:$0x1]
      %v1275 = vlaneseq
      %v1276 = vshrl.u32 %v1275, 7
      %v1277 = vsub.s32 0, %v1276
      %v1278 = vrot.slane %v1274, %v1277
      %v1279 = vld [vmem:[%s0 + $0x2] sm:$0x1]
      %v1280 = vlaneseq
      %v1281 = vshrl.u32 %v1280, 7
      %v1282 = vsub.s32 0, %v1281
      %v1283 = vrot.slane %v1279, %v1282
      %v1284 = vld [vmem:[%s0 + $0x3] sm:$0x1]
      %v1285 = vlaneseq
      %v1286 = vshrl.u32 %v1285, 7
      %v1287 = vsub.s32 0, %v1286
      %v1288 = vrot.slane %v1284, %v1287
      %v1289 = vmul.f32 %v1257, %v1283
      %v1290 = vmul.f32 %v1258, %v1283
      %v1291 = vmul.f32 %v1267, %v1288
      %v1292 = vmul.f32 %v1268, %v1288
      %v1293 = vadd.f32 %v1289, %v1291
      %v1294 = vadd.f32 %v1290, %v1292
      %v1295 = vmul.f32 %v1293, %v1273
      %v1296 = vmul.f32 %v1294, %v1273
      %v1297 = vadd.f32 %v1295, %v1278
      %v1298 = vadd.f32 %v1296, %v1278
      %v1299 = vmax.f32 %v1297, 0.0
      %v1300 = vmax.f32 %v1298, 0.0
      %vm1301 = vcmask 293888
      %1302 = vst.msk [vmem:[%s170] sm:$0xff] %vm1301, %v1299
      %vm1303 = vcmask 286720
      %1304 = vst.msk [vmem:[%s170 + $0x8] sm:$0x1] %vm1303, %v1300
      %p1305 = scmp.lt.s32.totalorder %s14, 1
      %s1306 = scalar_select %p1305, %s14, 1
      %s1307 = smul.addr %s1306, 2
      %s1308 = smul.addr %s1307, 8
      %s1309 = scalar_lea.vmem %s3, %s1308
      // Predicated region
      $region33: #{encoder_sub_track_a.3} parent=31 // pred_check
        %p1310 = pneg %p100
      $region34: #{encoder_sub_track_a.3} parent=31 // pred_check_branch
        %1312 = sbr.rel (%p1310) target = $region36
      $region35: #{encoder_sub_track_a.3} parent=31 // pred_region
        _
      $region36: #{encoder_sub_track_a.3} parent=31 // pred_fallthru
        _
    $region32: #{encoder_sub_track_a.3} parent=5 // pred_fallthru
      _
    %p1313 = scmp.le.s32.totalorder 2, %s9
    // Predicated region
    $region37: #{encoder_sub_track_a.3} parent=5 // pred_check
      %p1314 = pneg %p1313
    $region38: #{encoder_sub_track_a.3} parent=5 // pred_check_branch
      %1316 = sbr.rel (%p1314) target = $region40
    $region39: #{encoder_sub_track_a.3} parent=5 // pred_region
      %s1317 = ssub.s32 %s9, 2
      // Predicated region
      $region41: #{encoder_sub_track_a.3} parent=39 // pred_check
        %p1318 = pneg %p106
      $region42: #{encoder_sub_track_a.3} parent=39 // pred_check_branch
        %1320 = sbr.rel (%p1318) target = $region44
      $region43: #{encoder_sub_track_a.3} parent=39 // pred_region
        %p1321 = scmp.lt.s32.totalorder %s15, 1
        %s1322 = scalar_select %p1321, %s15, 1
        %s1323 = smul.addr %s1322, 2
        %s1324 = smul.addr %s1323, 8
        %s1325 = scalar_lea.vmem %s3, %s1324
      $region44: #{encoder_sub_track_a.3} parent=39 // pred_fallthru
        _
    $region40: #{encoder_sub_track_a.3} parent=5 // pred_fallthru
      _
  $region6: #{encoder_sub_track_a.3} parent=0 // loop_footer
    %s13 = sadd.s32 1, %s9
  $region7: #{encoder_sub_track_a.3} parent=0 // loop_footer_branch
    %8 = sbr.rel target = $region3
  $region8: #{encoder_sub_track_a.3} parent=0 // loop_exit
    _

</llo_original>
